<compile_context>
chip_gen: v7x
topology: tpu7x:2x2x1
jax: 0.10.0
libtpu: 0.0.40
codegen_flags: <defaults>
</compile_context>

<pallas_src>
import functools

import jax
import jax.numpy as jnp
from jax import lax
from jax.experimental import pallas as pl
from jax.experimental.pallas import tpu as pltpu

LOG2E = 1.4426950408889634  # softmax is computed with exp2(log2(e)·x)


# ----------------------------------------------------------------------------
# tiling helper
# ----------------------------------------------------------------------------
def _pick_tile(dim, target, align=128):
    """Largest tile <= target that divides `dim`, preferring multiples of
    `align` (128 = MXU edge / lane width), then multiples of 8, then the full
    dimension (a full-extent block is always a legal BlockSpec size)."""
    if dim <= target:
        return dim
    for a in (align, 8):
        t = (target // a) * a
        while t >= a:
            if dim % t == 0:
                return t
            t -= a
    return dim


# ----------------------------------------------------------------------------
# tiled linear:  y = x @ w.T + b     (w in torch layout (N, K))
# ----------------------------------------------------------------------------
def _linear_kernel(x_ref, w_ref, b_ref, o_ref, acc_ref):
    k = pl.program_id(2)

    @pl.when(k == 0)
    def _():
        acc_ref[...] = jnp.zeros_like(acc_ref)

    # x: (tm, tk), w: (tn, tk) -> contract over tk without materializing w.T.
    acc_ref[...] += lax.dot_general(
        x_ref[...], w_ref[...],
        dimension_numbers=(((1,), (1,)), ((), ())),
        preferred_element_type=jnp.float32)

    @pl.when(k == pl.num_programs(2) - 1)
    def _():
        o_ref[...] = (acc_ref[...] + b_ref[...].astype(jnp.float32)).astype(o_ref.dtype)


def pallas_linear(x, w, b, *, tm_target=512, tn_target=1024, tk_target=1024,
                  vmem_limit_bytes=64 * 1024 * 1024):
    """Tiled, auto-pipelined y = x @ w.T + b with torch-style weight (N, K).

    Tile targets give ~18 MiB of double-buffered VMEM at f32 worst case:
    comfortable on v5e/v6e (128 MiB) and still inside v7x's 64 MiB physical
    VMEM.  On v7x, additionally consider pipeline_mode=pl.Buffered(3) on the
    x / w in_specs to hide DMA start latency behind the 3.2 TB/s HBM.
    """
    M, K = x.shape
    N, K2 = w.shape
    assert K == K2, (x.shape, w.shape)
    tm = _pick_tile(M, tm_target, 128)
    tn = _pick_tile(N, tn_target, 128)
    tk = _pick_tile(K, tk_target, 128)
    grid = (M // tm, N // tn, K // tk)
    itemsize = jnp.dtype(x.dtype).itemsize
    cost = pl.CostEstimate(
        flops=2 * M * N * K,
        transcendentals=0,
        bytes_accessed=(M * K + N * K + M * N + N) * itemsize)
    return pl.pallas_call(
        _linear_kernel,
        out_shape=jax.ShapeDtypeStruct((M, N), x.dtype),
        grid_spec=pltpu.PrefetchScalarGridSpec(
            num_scalar_prefetch=0,
            grid=grid,
            in_specs=[
                pl.BlockSpec((tm, tk), lambda i, j, k: (i, k)),
                pl.BlockSpec((tn, tk), lambda i, j, k: (j, k)),
                pl.BlockSpec((1, tn), lambda i, j, k: (0, j)),
            ],
            out_specs=pl.BlockSpec((tm, tn), lambda i, j, k: (i, j)),
            scratch_shapes=[pltpu.VMEM((tm, tn), jnp.float32)],
        ),
        compiler_params=pltpu.CompilerParams(
            dimension_semantics=("parallel", "parallel", "arbitrary"),
            vmem_limit_bytes=vmem_limit_bytes),
        cost_estimate=cost,
    )(x, w, b.reshape(1, N))


def linear(x, w, b):
    """Dispatch: Pallas GEMM for lane-dense outputs, plain XLA otherwise.

    Outputs narrower than 128 lanes (e.g. the folded 1x1 out-adapter with
    N == C_in) hit masked vst.msk partial stores in Pallas (~4.5x penalty) with
    an essentially idle MXU, so those GEMMs stay in XLA per the review.
    """
    M, K = x.shape
    N = w.shape[0]
    if N < 128 or M < 8:
        return (jnp.dot(x, w.T, preferred_element_type=jnp.float32) + b).astype(x.dtype)
    return pallas_linear(x, w, b)


# ----------------------------------------------------------------------------
# attention core: combined-head layout, online softmax over the L (key) axis
# ----------------------------------------------------------------------------
def _attn_kernel(q_ref, kv_ref, o_ref, m_ref, l_ref, acc_ref, *, heads, head_dim):
    ki = pl.program_id(2)
    D = heads * head_dim

    @pl.when(ki == 0)
    def _():
        m_ref[...] = jnp.full_like(m_ref, -jnp.inf)
        l_ref[...] = jnp.zeros_like(l_ref)
        acc_ref[...] = jnp.zeros_like(acc_ref)

    q = q_ref[0]          # (tS, heads*hd) -- scale*log2(e) folded into to_q
    kv = kv_ref[0]        # (tL, 2*heads*hd) -- fused [K | V] projection output

    # Static per-head loop: the K/V tile is DMA'd once per grid step and reused
    # for every head.  All running-state scratch is indexed by the leading head
    # axis -> full-view, unmasked stores even when head_dim % 128 != 0.
    # TODO(synk): with head_dim < 64 the QK^T contraction under-fills the MXU;
    # production configs should use head_dim >= 64 or pack heads block-diagonally.
    for h in range(heads):
        lo, hi = h * head_dim, (h + 1) * head_dim
        qh = q[:, lo:hi]
        kh = kv[:, lo:hi]
        vh = kv[:, D + lo:D + hi]
        s = lax.dot_general(qh, kh, (((1,), (1,)), ((), ())),
                            preferred_element_type=jnp.float32)     # (tS, tL), log2-domain
        m_prev = m_ref[h]                                            # (tS, 1)
        m_new = jnp.maximum(m_prev, jnp.max(s, axis=-1, keepdims=True))
        alpha = jnp.exp2(m_prev - m_new)          # exp2: EUP-friendlier than exp
        p = jnp.exp2(s - m_new)
        l_ref[h] = alpha * l_ref[h] + jnp.sum(p, axis=-1, keepdims=True)
        m_ref[h] = m_new
        acc_ref[h] = alpha * acc_ref[h] + jnp.dot(
            p.astype(vh.dtype), vh, preferred_element_type=jnp.float32)

    @pl.when(ki == pl.num_programs(2) - 1)
    def _():
        # Exact reciprocal (f32 divide): keeps parity with the reference softmax.
        # (pl.reciprocal(approx=True) costs ~bf16 precision -> ~2e-2 abs error
        # after the output projections; only enable it if that is acceptable.)
        for h in range(heads):
            lo, hi = h * head_dim, (h + 1) * head_dim
            o_ref[0, :, lo:hi] = (acc_ref[h] / l_ref[h]).astype(o_ref.dtype)


def pallas_attention(q, kv, heads, rep, *, q_tile=256, kv_tile=512,
                     vmem_limit_bytes=32 * 1024 * 1024):
    """q: (B, S, D);  kv: (B_enc, L, 2*D) fused [K|V];  B == B_enc * rep.

    kv_tile=512 covers the full L of typical text encoders, so the K/V slab is
    fetched once per face and not re-DMA'd per query tile.  Worst case f32
    VMEM (D=2048, tL=512) stays ~26 MiB, inside the 32 MiB cap (v7x-safe);
    use bf16 compute or a smaller kv_tile for larger f32 configs.
    """
    B, S, D = q.shape
    B_enc, L, D2 = kv.shape
    assert D2 == 2 * D and B == B_enc * rep, (q.shape, kv.shape, rep)
    hd = D // heads
    assert heads * hd == D
    tS = _pick_tile(S, q_tile, 128)
    tL = _pick_tile(L, kv_tile, 128)
    grid = (B, S // tS, L // tL)
    itemsize = jnp.dtype(q.dtype).itemsize
    cost = pl.CostEstimate(
        flops=4 * B * S * L * D,
        transcendentals=B * heads * S * L,
        bytes_accessed=(2 * q.size + kv.size) * itemsize)
    kernel = functools.partial(_attn_kernel, heads=heads, head_dim=hd)
    return pl.pallas_call(
        kernel,
        out_shape=jax.ShapeDtypeStruct((B, S, D), q.dtype),
        grid_spec=pltpu.PrefetchScalarGridSpec(
            num_scalar_prefetch=0,
            grid=grid,
            in_specs=[
                pl.BlockSpec((1, tS, D), lambda b, si, ki: (b, si, 0)),
                # Cube-face broadcast of the encoder happens via the index_map
                # (b // rep) -- the repeated encoder is never materialized in HBM.
                pl.BlockSpec((1, tL, 2 * D), lambda b, si, ki: (b // rep, ki, 0)),
            ],
            out_specs=pl.BlockSpec((1, tS, D), lambda b, si, ki: (b, si, 0)),
            scratch_shapes=[
                pltpu.VMEM((heads, tS, 1), jnp.float32),    # running max  m
                pltpu.VMEM((heads, tS, 1), jnp.float32),    # running denom l
                pltpu.VMEM((heads, tS, hd), jnp.float32),   # output accumulator
            ],
        ),
        compiler_params=pltpu.CompilerParams(
            dimension_semantics=("parallel", "parallel", "arbitrary"),
            vmem_limit_bytes=vmem_limit_bytes),
        cost_estimate=cost,
    )(q, kv)


# ----------------------------------------------------------------------------
# one-time parameter preparation (do at load time, NOT per forward call)
# ----------------------------------------------------------------------------
def prepare_params(raw, *, heads, cross_attention=True):
    """Fold / fuse weights once:
      * softmax scale and log2(e) into to_q,
      * the 1x1 in-adapter into to_q (valid for cross-attention, where the
        adapted hidden states only feed the query projection),
      * to_k / to_v into a single fused [K|V] projection,
      * to_out into the 1x1 out-adapter.
    """
    inner = raw["q_w"].shape[0]
    head_dim = inner // heads
    scale = head_dim ** (-0.5) * LOG2E        # exp2-domain softmax scale

    q_w, q_b = raw["q_w"], raw["q_b"]
    prepared = {}

    in_w, in_b = raw.get("in_w"), raw.get("in_b")
    if in_w is not None:
        if cross_attention:
            q_b = q_w @ in_b + q_b            # uses the ORIGINAL q_w
            q_w = q_w @ in_w
        else:
            # self-attention: adapted x also feeds K/V, keep the adapter explicit
            prepared["in_w"], prepared["in_b"] = in_w, in_b

    prepared["q_w"] = q_w * scale
    prepared["q_b"] = q_b * scale
    prepared["kv_w"] = jnp.concatenate([raw["k_w"], raw["v_w"]], axis=0)
    prepared["kv_b"] = jnp.concatenate([raw["k_b"], raw["v_b"]], axis=0)

    o_w, o_b = raw["o_w"], raw["o_b"]
    out_w, out_b = raw.get("out_w"), raw.get("out_b")
    if out_w is not None:
        o_b = out_w @ o_b + out_b             # uses the ORIGINAL o_w
        o_w = out_w @ o_w
    prepared["o_w"] = o_w
    prepared["o_b"] = o_b
    return prepared


# ----------------------------------------------------------------------------
# InflatedCrossAttention forward (wrapper around the Pallas kernels)
# ----------------------------------------------------------------------------
def inflated_cross_attention_forward(params, hidden_states, encoder_hidden_states=None,
                                     attention_mask=None, *, heads, compute_dtype=None):
    # TODO(synk): attention_mask is not supported (module is exercised with None).
    assert attention_mask is None
    orig_dtype = hidden_states.dtype
    B, C, H, W = hidden_states.shape
    S = H * W

    if compute_dtype is not None:
        # bf16 works on all generations (MXU is bf16-native everywhere and
        # every Pallas accumulator stays f32); halves HBM traffic.
        cast = lambda t: t.astype(compute_dtype) if jnp.issubdtype(t.dtype, jnp.floating) else t
        params = jax.tree_util.tree_map(cast, params)
        hidden_states = hidden_states.astype(compute_dtype)
        if encoder_hidden_states is not None:
            encoder_hidden_states = encoder_hidden_states.astype(compute_dtype)

    # ---- NCHW -> channel-last once; stay channel-last until the very end ----
    x2d = jnp.transpose(hidden_states, (0, 2, 3, 1)).reshape(B * S, C)

    # Unfolded in-adapter path (self-attention configs only).
    if "in_w" in params:
        x2d = linear(x2d, params["in_w"], params["in_b"])

    inner = params["q_w"].shape[0]

    # ---- cube-face handling of encoder_hidden_states -------------------------
    if encoder_hidden_states is None:
        assert params["q_w"].shape[1] == x2d.shape[1], \
            "in-adapter-folded params require encoder_hidden_states"
        context = x2d.reshape(B, S, x2d.shape[1])
        ctx_B = B
    else:
        context = encoder_hidden_states
        ctx_B = context.shape[0]
        if B % 6 == 0 and ctx_B != B and ctx_B != B // 6:
            # Rare torch fallback: repeat_interleave(6) regardless of divisibility.
            context = jnp.repeat(context, 6, axis=0)
            ctx_B = context.shape[0]
    assert B % ctx_B == 0, (B, ctx_B)
    rep = B // ctx_B            # faces sharing one encoder row (broadcast via index_map)
    L = context.shape[1]
    cross_dim = context.shape[2]
    assert params["kv_w"].shape[1] == cross_dim, "to_k/to_v input dim mismatch"

    # ---- projections (scale + in-adapter already folded into q_w/q_b) --------
    q = linear(x2d, params["q_w"], params["q_b"]).reshape(B, S, inner)

    # Fused K/V projection: the context activation is read once and the output
    # is one lane-dense (2*inner)-wide slab consumed directly by attention.
    kv = linear(context.reshape(ctx_B * L, cross_dim), params["kv_w"], params["kv_b"])
    kv = kv.reshape(ctx_B, L, 2 * inner)

    # ---- attention core (combined-head layout, online softmax over L) --------
    o = pallas_attention(q, kv, heads, rep)

    # ---- to_out (with the 1x1 out-adapter folded in); dropout is identity ----
    out2d = linear(o.reshape(B * S, inner), params["o_w"], params["o_b"])
    assert out2d.shape[-1] == C, (out2d.shape, C)

    # single transpose back to NCHW at the very end
    out = out2d.reshape(B, H, W, C).transpose(0, 3, 1, 2)
    return out.astype(orig_dtype)


# ----------------------------------------------------------------------------
# pure-jnp reference of the original module (sanity check, uses RAW params)
# ----------------------------------------------------------------------------
def reference_forward(params, hidden_states, encoder_hidden_states=None, *,
                      heads, expected_dim):
    B, C, H, W = hidden_states.shape
    lin = lambda x, w, b: x @ w.T + b
    x = jnp.transpose(hidden_states, (0, 2, 3, 1)).reshape(B * H * W, C)
    if C != expected_dim:
        x = lin(x, params["in_w"], params["in_b"])
    x = x.reshape(B, H * W, expected_dim)
    if encoder_hidden_states is None:
        enc = x
    else:
        enc = encoder_hidden_states
        if B % 6 == 0 and enc.shape[0] != B:
            enc = jnp.repeat(enc, 6, axis=0)
    S, L, cd = x.shape[1], enc.shape[1], enc.shape[2]
    inner = params["q_w"].shape[0]
    hd = inner // heads
    q = lin(x.reshape(B * S, -1), params["q_w"], params["q_b"]).reshape(B, S, heads, hd)
    k = lin(enc.reshape(B * L, cd), params["k_w"], params["k_b"]).reshape(B, L, heads, hd)
    v = lin(enc.reshape(B * L, cd), params["v_w"], params["v_b"]).reshape(B, L, heads, hd)
    q, k, v = (t.transpose(0, 2, 1, 3) for t in (q, k, v))
    s = jnp.einsum("bhsd,bhld->bhsl", q, k) * hd ** (-0.5)
    p = jax.nn.softmax(s, axis=-1)
    o = jnp.einsum("bhsl,bhld->bhsd", p, v).transpose(0, 2, 1, 3).reshape(B * S, inner)
    o = lin(o, params["o_w"], params["o_b"])
    if C != expected_dim:
        o = lin(o, params["out_w"], params["out_b"])
    return o.reshape(B, H, W, C).transpose(0, 3, 1, 2)


# ----------------------------------------------------------------------------
if __name__ == "__main__":
    # 6 cube faces (B=6), 4 latent channels (!= expected_dim -> both 1x1
    # adapters exist and get folded at prepare time), 8x8 spatial,
    # 4 heads x 64 head_dim, text context (1, 16, 128) shared across the faces.
    B, C_in, H, W = 6, 4, 8, 8
    expected_dim, heads, head_dim = 256, 4, 64
    inner = heads * head_dim
    cross_dim, L = 128, 16

    key = jax.random.PRNGKey(0)
    ks = jax.random.split(key, 16)
    init_w = lambda k, shape: jax.random.normal(k, shape, jnp.float32) / jnp.sqrt(shape[-1])
    init_b = lambda k, shape: 0.1 * jax.random.normal(k, shape, jnp.float32)

    raw_params = {
        # DimensionAdapter.proj_4d weights stored as (out, in) (1x1 conv squeezed)
        "in_w":  init_w(ks[0], (expected_dim, C_in)),  "in_b":  init_b(ks[1], (expected_dim,)),
        "q_w":   init_w(ks[2], (inner, expected_dim)), "q_b":   init_b(ks[3], (inner,)),
        "k_w":   init_w(ks[4], (inner, cross_dim)),    "k_b":   init_b(ks[5], (inner,)),
        "v_w":   init_w(ks[6], (inner, cross_dim)),    "v_b":   init_b(ks[7], (inner,)),
        "o_w":   init_w(ks[8], (expected_dim, inner)), "o_b":   init_b(ks[9], (expected_dim,)),
        "out_w": init_w(ks[10], (C_in, expected_dim)), "out_b": init_b(ks[11], (C_in,)),
    }

    hidden_states = jax.random.normal(ks[12], (B, C_in, H, W), jnp.float32)
    encoder_hidden_states = jax.random.normal(ks[13], (1, L, cross_dim), jnp.float32)

    # One-time weight folding / fusion (load-time, not per forward call).
    params = prepare_params(raw_params, heads=heads, cross_attention=True)

    out = inflated_cross_attention_forward(
        params, hidden_states, encoder_hidden_states, heads=heads)
    out = jax.block_until_ready(out)

    ref = reference_forward(
        raw_params, hidden_states, encoder_hidden_states,
        heads=heads, expected_dim=expected_dim)

    assert out.shape == hidden_states.shape, (out.shape, hidden_states.shape)
    err = float(jnp.max(jnp.abs(out - ref)))
    assert jnp.allclose(out, ref, atol=5e-3, rtol=5e-3), err
    print("KERNEL_OK")
</pallas_src>

<mosaic_0001>
module attributes {stable_mosaic.version = 11 : i64} {
  func.func @_linear_kernel(%arg0: i32, %arg1: i32, %arg2: i32, %arg3: memref<384x4xf32, #tpu.memory_space<vmem>>, %arg4: memref<256x4xf32, #tpu.memory_space<vmem>>, %arg5: memref<1x256xf32, #tpu.memory_space<vmem>>, %arg6: memref<384x256xf32, #tpu.memory_space<vmem>>, %arg7: memref<384x256xf32, #tpu.memory_space<vmem>>) attributes {dimension_semantics = [#tpu.dimension_semantics<parallel>, #tpu.dimension_semantics<parallel>, #tpu.dimension_semantics<arbitrary>], iteration_bounds = array<i64: 1, 1, 1>, scalar_prefetch = 0 : i64, scratch_operands = 1 : i64, tpu.core_type = #tpu.core_type<tc>, window_params = [{transform_indices = @transform_0, window_bounds = array<i64: 384, 4>}, {transform_indices = @transform_1, window_bounds = array<i64: 256, 4>}, {transform_indices = @transform_2, window_bounds = array<i64: 1, 256>}, {transform_indices = @transform_3, window_bounds = array<i64: 384, 256>}]} {
    %c0_i32 = arith.constant 0 : i32
    %0 = arith.cmpi eq, %arg2, %c0_i32 : i32
    %1 = arith.extui %0 : i1 to i32
    %c0_i32_0 = arith.constant 0 : i32
    %2 = arith.cmpi ne, %1, %c0_i32_0 : i32
    scf.if %2 {
      %cst_10 = arith.constant 0.000000e+00 : f32
      %12 = vector.broadcast %cst_10 : f32 to vector<384x256xf32>
      %c0_11 = arith.constant 0 : index
      %c0_12 = arith.constant 0 : index
      %13 = vector.load %arg7[%c0_11, %c0_12] : memref<384x256xf32, #tpu.memory_space<vmem>>, vector<384x256xf32>
      tpu.vector_store %arg7[%c0_11, %c0_12], %12 {strides = array<i32>} : memref<384x256xf32, #tpu.memory_space<vmem>>, vector<384x256xf32>,
    } else {
    }
    %c0 = arith.constant 0 : index
    %c0_1 = arith.constant 0 : index
    %3 = vector.load %arg7[%c0, %c0_1] : memref<384x256xf32, #tpu.memory_space<vmem>>, vector<384x256xf32>
    %c0_2 = arith.constant 0 : index
    %c0_3 = arith.constant 0 : index
    %4 = vector.load %arg3[%c0_2, %c0_3] : memref<384x4xf32, #tpu.memory_space<vmem>>, vector<384x4xf32>
    %c0_4 = arith.constant 0 : index
    %c0_5 = arith.constant 0 : index
    %5 = vector.load %arg4[%c0_4, %c0_5] : memref<256x4xf32, #tpu.memory_space<vmem>>, vector<256x4xf32>
    %cst = arith.constant dense<0.000000e+00> : vector<384x256xf32>
    %6 = tpu.matmul %4, %5, %cst {dimension_numbers = #tpu.dot_dimension_numbers<[1], [1], [0], [0], [0, 0, 1, 0], [], []>} : vector<384x4xf32>, vector<256x4xf32>, vector<384x256xf32> -> vector<384x256xf32>
    %7 = arith.addf %3, %6 : vector<384x256xf32>
    %c0_6 = arith.constant 0 : index
    %c0_7 = arith.constant 0 : index
    %8 = vector.load %arg7[%c0_6, %c0_7] : memref<384x256xf32, #tpu.memory_space<vmem>>, vector<384x256xf32>
    tpu.vector_store %arg7[%c0_6, %c0_7], %7 {strides = array<i32>} : memref<384x256xf32, #tpu.memory_space<vmem>>, vector<384x256xf32>,
    %c0_i32_8 = arith.constant 0 : i32
    %9 = arith.cmpi eq, %arg2, %c0_i32_8 : i32
    %10 = arith.extui %9 : i1 to i32
    %c0_i32_9 = arith.constant 0 : i32
    %11 = arith.cmpi ne, %10, %c0_i32_9 : i32
    scf.if %11 {
      %c0_10 = arith.constant 0 : index
      %c0_11 = arith.constant 0 : index
      %12 = vector.load %arg7[%c0_10, %c0_11] : memref<384x256xf32, #tpu.memory_space<vmem>>, vector<384x256xf32>
      %c0_12 = arith.constant 0 : index
      %c0_13 = arith.constant 0 : index
      %13 = vector.load %arg5[%c0_12, %c0_13] : memref<1x256xf32, #tpu.memory_space<vmem>>, vector<1x256xf32>
      %14 = vector.broadcast %13 : vector<1x256xf32> to vector<384x256xf32>
      %15 = arith.addf %12, %14 : vector<384x256xf32>
      %c0_14 = arith.constant 0 : index
      %c0_15 = arith.constant 0 : index
      %16 = vector.load %arg6[%c0_14, %c0_15] : memref<384x256xf32, #tpu.memory_space<vmem>>, vector<384x256xf32>
      tpu.vector_store %arg6[%c0_14, %c0_15], %15 {strides = array<i32>} : memref<384x256xf32, #tpu.memory_space<vmem>>, vector<384x256xf32>,
    } else {
    }
    return
  }
  func.func @transform_0(%arg0: i32, %arg1: i32, %arg2: i32) -> (i32, i32) {
    %c0_i32 = arith.constant 0 : i32
    return %arg0, %arg2 : i32, i32
  }
  func.func @transform_1(%arg0: i32, %arg1: i32, %arg2: i32) -> (i32, i32) {
    %c0_i32 = arith.constant 0 : i32
    return %arg1, %arg2 : i32, i32
  }
  func.func @transform_2(%arg0: i32, %arg1: i32, %arg2: i32) -> (i32, i32) {
    %c0_i32 = arith.constant 0 : i32
    %c0_i32_0 = arith.constant 0 : i32
    return %c0_i32, %arg1 : i32, i32
  }
  func.func @transform_3(%arg0: i32, %arg1: i32, %arg2: i32) -> (i32, i32) {
    %c0_i32 = arith.constant 0 : i32
    return %arg0, %arg1 : i32, i32
  }
}

</mosaic_0001>

<llo_original>
// kernel: tpu_custom_call.1
$region0: #{tpu_custom_call.1}
  #allocation0 [shape = 'u32[]', space=smem, size = 0x4, offset = 0x4, fixed_abs, tag = 'smem constant byte address 0x4 - core index']
  #allocation1 [shape = 'u32[144,128]{1,0:T(1,128)}', space=vmem, size = 0x12000, scoped, tag = 'internal scratch']
  #allocation2 [shape = 'f32[384,256]{1,0:T(8,128)}', space=vmem, size = 0x60000, scoped, tag = 'scratch operand']
  %s0 = inlined_call_operand.hbm [shape: f32[384,4], index: 0, kind: input, shape index: {}]
  %s1 = inlined_call_operand.hbm [shape: f32[256,4], index: 1, kind: input, shape index: {}]
  %s2 = inlined_call_operand.hbm [shape: f32[1,256], index: 2, kind: input, shape index: {}]
  %s3 = inlined_call_operand.hbm [shape: f32[384,256], index: 3, kind: output, shape index: {}]
  %s4 = sld [smem:[#allocation0]]
  $region42: #{tpu_custom_call.1} parent=0
    _
  %s6 = ssub.s32 1, %s4
  %s7 = scalar_select 0, %s6, %s4
  $region1: #{tpu_custom_call.1} parent=0
    #allocation3 [shape = 'u8[196608]{0}', space=vmem, size = 0x30000, scoped, tag = 'input window, operand 0, single buffered']
    #allocation4 [shape = 's32[1]{0}', space=sflag, size = 0x4, scoped, tag = 'scoped memory for tpu_custom_call.1']
    #allocation5 [shape = 's32[1]{0}', space=sflag, size = 0x4, scoped, tag = 'scoped memory for tpu_custom_call.1']
    #allocation6 [shape = 'u8[131072]{0}', space=vmem, size = 0x20000, scoped, tag = 'input window, operand 1, single buffered']
    #allocation7 [shape = 's32[1]{0}', space=sflag, size = 0x4, scoped, tag = 'scoped memory for tpu_custom_call.1']
    #allocation8 [shape = 'u8[1024]{0}', space=vmem, size = 0x400, scoped, tag = 'input window, operand 2, single buffered']
    #allocation9 [shape = 'u8[393216]{0}', space=vmem, size = 0x60000, scoped, tag = 'output window, operand 0, single buffered']
    %8 = vsyncpa [#allocation4], 0
    %9 = vsyncpa [#allocation7], 0
    %10 = vsyncpa [#allocation5], 0
    // Predicated region
    $region2: #{tpu_custom_call.1} parent=1 // pred_check
      _
    $region3: #{tpu_custom_call.1} parent=1 // pred_check_branch
      %12 = sbr.rel (0) target = $region5
    $region4: #{tpu_custom_call.1} parent=1 // pred_region
      %s14 = ssub.s32 6144, 6144
      %15 = vsyncadd [#allocation4], %s14
      %s16 = sshll.u32 [#allocation3], 4
      %s17 = int_to_ptr.vmem [resolvable:$true] %s16
      %22 = dma.hbm_to_vmem [thread:$0]  %s0, 6144, %s17, [#allocation4], 128, 128, 8
    $region5: #{tpu_custom_call.1} parent=1 // pred_fallthru
      _
    // Predicated region
    $region6: #{tpu_custom_call.1} parent=1 // pred_check
      _
    $region7: #{tpu_custom_call.1} parent=1 // pred_check_branch
      %24 = sbr.rel (0) target = $region9
    $region8: #{tpu_custom_call.1} parent=1 // pred_region
      %s26 = ssub.s32 4096, 4096
      %27 = vsyncadd [#allocation7], %s26
      %s28 = sshll.u32 [#allocation6], 4
      %s29 = int_to_ptr.vmem [resolvable:$true] %s28
      %34 = dma.hbm_to_vmem [thread:$0]  %s1, 4096, %s29, [#allocation7], 128, 128, 8
    $region9: #{tpu_custom_call.1} parent=1 // pred_fallthru
      _
    // Predicated region
    $region10: #{tpu_custom_call.1} parent=1 // pred_check
      _
    $region11: #{tpu_custom_call.1} parent=1 // pred_check_branch
      %36 = sbr.rel (0) target = $region13
    $region12: #{tpu_custom_call.1} parent=1 // pred_region
      %s38 = ssub.s32 32, 32
      %39 = vsyncadd [#allocation7], %s38
      %s41 = sshll.u32 [#allocation8], 4
      %s42 = int_to_ptr.vmem [resolvable:$true] %s41
      %44 = dma.hbm_to_vmem [thread:$0]  %s2, 32, %s42, [#allocation7]
    $region13: #{tpu_custom_call.1} parent=1 // pred_fallthru
      _
    // Predicated region
    $region14: #{tpu_custom_call.1} parent=1 // pred_check
      _
    $region15: #{tpu_custom_call.1} parent=1 // pred_check_branch
      %46 = sbr.rel (0) target = $region17
    $region16: #{tpu_custom_call.1} parent=1 // pred_region
      %47 = dma.done [#allocation4], 6144
    $region17: #{tpu_custom_call.1} parent=1 // pred_fallthru
      _
    // Predicated region
    $region18: #{tpu_custom_call.1} parent=1 // pred_check
      _
    $region19: #{tpu_custom_call.1} parent=1 // pred_check_branch
      %49 = sbr.rel (0) target = $region21
    $region20: #{tpu_custom_call.1} parent=1 // pred_region
      %50 = dma.done [#allocation7], 4096
    $region21: #{tpu_custom_call.1} parent=1 // pred_fallthru
      _
    // Predicated region
    $region22: #{tpu_custom_call.1} parent=1 // pred_check
      _
    $region23: #{tpu_custom_call.1} parent=1 // pred_check_branch
      %52 = sbr.rel (0) target = $region25
    $region24: #{tpu_custom_call.1} parent=1 // pred_region
      %53 = dma.done [#allocation7], 32
    $region25: #{tpu_custom_call.1} parent=1 // pred_fallthru
      _
    %p54 = scmp.eq.s32.totalorder 0, 0
    // Predicated region
    $region26: #{tpu_custom_call.1} parent=1 // pred_check
      %p55 = pneg %p54
    $region27: #{tpu_custom_call.1} parent=1 // pred_check_branch
      %57 = sbr.rel (%p55) target = $region29
    $region28: #{tpu_custom_call.1} parent=1 // pred_region
      %58 = vst [vmem:[#allocation2] sm:$0xff] 0.0
      %59 = vst [vmem:[#allocation2 + $0x8] sm:$0xff] 0.0
      %60 = vst [vmem:[#allocation2 + $0x10] sm:$0xff] 0.0
      %61 = vst [vmem:[#allocation2 + $0x18] sm:$0xff] 0.0
      %62 = vst [vmem:[#allocation2 + $0x20] sm:$0xff] 0.0
      %63 = vst [vmem:[#allocation2 + $0x28] sm:$0xff] 0.0
      %64 = vst [vmem:[#allocation2 + $0x30] sm:$0xff] 0.0
      %65 = vst [vmem:[#allocation2 + $0x38] sm:$0xff] 0.0
      %66 = vst [vmem:[#allocation2 + $0x40] sm:$0xff] 0.0
      %67 = vst [vmem:[#allocation2 + $0x48] sm:$0xff] 0.0
      %68 = vst [vmem:[#allocation2 + $0x50] sm:$0xff] 0.0
      %69 = vst [vmem:[#allocation2 + $0x58] sm:$0xff] 0.0
      %70 = vst [vmem:[#allocation2 + $0x60] sm:$0xff] 0.0
      %71 = vst [vmem:[#allocation2 + $0x68] sm:$0xff] 0.0
      %72 = vst [vmem:[#allocation2 + $0x70] sm:$0xff] 0.0
      %73 = vst [vmem:[#allocation2 + $0x78] sm:$0xff] 0.0
      %74 = vst [vmem:[#allocation2 + $0x80] sm:$0xff] 0.0
      %75 = vst [vmem:[#allocation2 + $0x88] sm:$0xff] 0.0
      %76 = vst [vmem:[#allocation2 + $0x90] sm:$0xff] 0.0
      %77 = vst [vmem:[#allocation2 + $0x98] sm:$0xff] 0.0
      %78 = vst [vmem:[#allocation2 + $0xa0] sm:$0xff] 0.0
      %79 = vst [vmem:[#allocation2 + $0xa8] sm:$0xff] 0.0
      %80 = vst [vmem:[#allocation2 + $0xb0] sm:$0xff] 0.0
      %81 = vst [vmem:[#allocation2 + $0xb8] sm:$0xff] 0.0
      %82 = vst [vmem:[#allocation2 + $0xc0] sm:$0xff] 0.0
      %83 = vst [vmem:[#allocation2 + $0xc8] sm:$0xff] 0.0
      %84 = vst [vmem:[#allocation2 + $0xd0] sm:$0xff] 0.0
      %85 = vst [vmem:[#allocation2 + $0xd8] sm:$0xff] 0.0
      %86 = vst [vmem:[#allocation2 + $0xe0] sm:$0xff] 0.0
      %87 = vst [vmem:[#allocation2 + $0xe8] sm:$0xff] 0.0
      %88 = vst [vmem:[#allocation2 + $0xf0] sm:$0xff] 0.0
      %89 = vst [vmem:[#allocation2 + $0xf8] sm:$0xff] 0.0
      %90 = vst [vmem:[#allocation2 + $0x100] sm:$0xff] 0.0
      %91 = vst [vmem:[#allocation2 + $0x108] sm:$0xff] 0.0
      %92 = vst [vmem:[#allocation2 + $0x110] sm:$0xff] 0.0
      %93 = vst [vmem:[#allocation2 + $0x118] sm:$0xff] 0.0
      %94 = vst [vmem:[#allocation2 + $0x120] sm:$0xff] 0.0
      %95 = vst [vmem:[#allocation2 + $0x128] sm:$0xff] 0.0
      %96 = vst [vmem:[#allocation2 + $0x130] sm:$0xff] 0.0
      %97 = vst [vmem:[#allocation2 + $0x138] sm:$0xff] 0.0
      %98 = vst [vmem:[#allocation2 + $0x140] sm:$0xff] 0.0
      %99 = vst [vmem:[#allocation2 + $0x148] sm:$0xff] 0.0
      %100 = vst [vmem:[#allocation2 + $0x150] sm:$0xff] 0.0
      %101 = vst [vmem:[#allocation2 + $0x158] sm:$0xff] 0.0
      %102 = vst [vmem:[#allocation2 + $0x160] sm:$0xff] 0.0
      %103 = vst [vmem:[#allocation2 + $0x168] sm:$0xff] 0.0
      %104 = vst [vmem:[#allocation2 + $0x170] sm:$0xff] 0.0
      %105 = vst [vmem:[#allocation2 + $0x178] sm:$0xff] 0.0
      %106 = vst [vmem:[#allocation2 + $0x180] sm:$0xff] 0.0
      %107 = vst [vmem:[#allocation2 + $0x188] sm:$0xff] 0.0
      %108 = vst [vmem:[#allocation2 + $0x190] sm:$0xff] 0.0
      %109 = vst [vmem:[#allocation2 + $0x198] sm:$0xff] 0.0
      %110 = vst [vmem:[#allocation2 + $0x1a0] sm:$0xff] 0.0
      %111 = vst [vmem:[#allocation2 + $0x1a8] sm:$0xff] 0.0
      %112 = vst [vmem:[#allocation2 + $0x1b0] sm:$0xff] 0.0
      %113 = vst [vmem:[#allocation2 + $0x1b8] sm:$0xff] 0.0
      %114 = vst [vmem:[#allocation2 + $0x1c0] sm:$0xff] 0.0
      %115 = vst [vmem:[#allocation2 + $0x1c8] sm:$0xff] 0.0
      %116 = vst [vmem:[#allocation2 + $0x1d0] sm:$0xff] 0.0
      %117 = vst [vmem:[#allocation2 + $0x1d8] sm:$0xff] 0.0
      %118 = vst [vmem:[#allocation2 + $0x1e0] sm:$0xff] 0.0
      %119 = vst [vmem:[#allocation2 + $0x1e8] sm:$0xff] 0.0
      %120 = vst [vmem:[#allocation2 + $0x1f0] sm:$0xff] 0.0
      %121 = vst [vmem:[#allocation2 + $0x1f8] sm:$0xff] 0.0
      %122 = vst [vmem:[#allocation2 + $0x200] sm:$0xff] 0.0
      %123 = vst [vmem:[#allocation2 + $0x208] sm:$0xff] 0.0
      %124 = vst [vmem:[#allocation2 + $0x210] sm:$0xff] 0.0
      %125 = vst [vmem:[#allocation2 + $0x218] sm:$0xff] 0.0
      %126 = vst [vmem:[#allocation2 + $0x220] sm:$0xff] 0.0
      %127 = vst [vmem:[#allocation2 + $0x228] sm:$0xff] 0.0
      %128 = vst [vmem:[#allocation2 + $0x230] sm:$0xff] 0.0
      %129 = vst [vmem:[#allocation2 + $0x238] sm:$0xff] 0.0
      %130 = vst [vmem:[#allocation2 + $0x240] sm:$0xff] 0.0
      %131 = vst [vmem:[#allocation2 + $0x248] sm:$0xff] 0.0
      %132 = vst [vmem:[#allocation2 + $0x250] sm:$0xff] 0.0
      %133 = vst [vmem:[#allocation2 + $0x258] sm:$0xff] 0.0
      %134 = vst [vmem:[#allocation2 + $0x260] sm:$0xff] 0.0
      %135 = vst [vmem:[#allocation2 + $0x268] sm:$0xff] 0.0
      %136 = vst [vmem:[#allocation2 + $0x270] sm:$0xff] 0.0
      %137 = vst [vmem:[#allocation2 + $0x278] sm:$0xff] 0.0
      %138 = vst [vmem:[#allocation2 + $0x280] sm:$0xff] 0.0
      %139 = vst [vmem:[#allocation2 + $0x288] sm:$0xff] 0.0
      %140 = vst [vmem:[#allocation2 + $0x290] sm:$0xff] 0.0
      %141 = vst [vmem:[#allocation2 + $0x298] sm:$0xff] 0.0
      %142 = vst [vmem:[#allocation2 + $0x2a0] sm:$0xff] 0.0
      %143 = vst [vmem:[#allocation2 + $0x2a8] sm:$0xff] 0.0
      %144 = vst [vmem:[#allocation2 + $0x2b0] sm:$0xff] 0.0
      %145 = vst [vmem:[#allocation2 + $0x2b8] sm:$0xff] 0.0
      %146 = vst [vmem:[#allocation2 + $0x2c0] sm:$0xff] 0.0
      %147 = vst [vmem:[#allocation2 + $0x2c8] sm:$0xff] 0.0
      %148 = vst [vmem:[#allocation2 + $0x2d0] sm:$0xff] 0.0
      %149 = vst [vmem:[#allocation2 + $0x2d8] sm:$0xff] 0.0
      %150 = vst [vmem:[#allocation2 + $0x2e0] sm:$0xff] 0.0
      %151 = vst [vmem:[#allocation2 + $0x2e8] sm:$0xff] 0.0
      %152 = vst [vmem:[#allocation2 + $0x2f0] sm:$0xff] 0.0
      %153 = vst [vmem:[#allocation2 + $0x2f8] sm:$0xff] 0.0
    $region29: #{tpu_custom_call.1} parent=1 // pred_fallthru
      _
    %v154 = vld [vmem:[#allocation2] sm:$0xff]
    %v155 = vld [vmem:[#allocation2 + $0x8] sm:$0xff]
    %v156 = vld [vmem:[#allocation2 + $0x10] sm:$0xff]
    %v157 = vld [vmem:[#allocation2 + $0x18] sm:$0xff]
    %v158 = vld [vmem:[#allocation2 + $0x20] sm:$0xff]
    %v159 = vld [vmem:[#allocation2 + $0x28] sm:$0xff]
    %v160 = vld [vmem:[#allocation2 + $0x30] sm:$0xff]
    %v161 = vld [vmem:[#allocation2 + $0x38] sm:$0xff]
    %v162 = vld [vmem:[#allocation2 + $0x40] sm:$0xff]
    %v163 = vld [vmem:[#allocation2 + $0x48] sm:$0xff]
    %v164 = vld [vmem:[#allocation2 + $0x50] sm:$0xff]
    %v165 = vld [vmem:[#allocation2 + $0x58] sm:$0xff]
    %v166 = vld [vmem:[#allocation2 + $0x60] sm:$0xff]
    %v167 = vld [vmem:[#allocation2 + $0x68] sm:$0xff]
    %v168 = vld [vmem:[#allocation2 + $0x70] sm:$0xff]
    %v169 = vld [vmem:[#allocation2 + $0x78] sm:$0xff]
    %v170 = vld [vmem:[#allocation2 + $0x80] sm:$0xff]
    %v171 = vld [vmem:[#allocation2 + $0x88] sm:$0xff]
    %v172 = vld [vmem:[#allocation2 + $0x90] sm:$0xff]
    %v173 = vld [vmem:[#allocation2 + $0x98] sm:$0xff]
    %v174 = vld [vmem:[#allocation2 + $0xa0] sm:$0xff]
    %v175 = vld [vmem:[#allocation2 + $0xa8] sm:$0xff]
    %v176 = vld [vmem:[#allocation2 + $0xb0] sm:$0xff]
    %v177 = vld [vmem:[#allocation2 + $0xb8] sm:$0xff]
    %v178 = vld [vmem:[#allocation2 + $0xc0] sm:$0xff]
    %v179 = vld [vmem:[#allocation2 + $0xc8] sm:$0xff]
    %v180 = vld [vmem:[#allocation2 + $0xd0] sm:$0xff]
    %v181 = vld [vmem:[#allocation2 + $0xd8] sm:$0xff]
    %v182 = vld [vmem:[#allocation2 + $0xe0] sm:$0xff]
    %v183 = vld [vmem:[#allocation2 + $0xe8] sm:$0xff]
    %v184 = vld [vmem:[#allocation2 + $0xf0] sm:$0xff]
    %v185 = vld [vmem:[#allocation2 + $0xf8] sm:$0xff]
    %v186 = vld [vmem:[#allocation2 + $0x100] sm:$0xff]
    %v187 = vld [vmem:[#allocation2 + $0x108] sm:$0xff]
    %v188 = vld [vmem:[#allocation2 + $0x110] sm:$0xff]
    %v189 = vld [vmem:[#allocation2 + $0x118] sm:$0xff]
    %v190 = vld [vmem:[#allocation2 + $0x120] sm:$0xff]
    %v191 = vld [vmem:[#allocation2 + $0x128] sm:$0xff]
    %v192 = vld [vmem:[#allocation2 + $0x130] sm:$0xff]
    %v193 = vld [vmem:[#allocation2 + $0x138] sm:$0xff]
    %v194 = vld [vmem:[#allocation2 + $0x140] sm:$0xff]
    %v195 = vld [vmem:[#allocation2 + $0x148] sm:$0xff]
    %v196 = vld [vmem:[#allocation2 + $0x150] sm:$0xff]
    %v197 = vld [vmem:[#allocation2 + $0x158] sm:$0xff]
    %v198 = vld [vmem:[#allocation2 + $0x160] sm:$0xff]
    %v199 = vld [vmem:[#allocation2 + $0x168] sm:$0xff]
    %v200 = vld [vmem:[#allocation2 + $0x170] sm:$0xff]
    %v201 = vld [vmem:[#allocation2 + $0x178] sm:$0xff]
    %v202 = vld [vmem:[#allocation2 + $0x180] sm:$0xff]
    %v203 = vld [vmem:[#allocation2 + $0x188] sm:$0xff]
    %v204 = vld [vmem:[#allocation2 + $0x190] sm:$0xff]
    %v205 = vld [vmem:[#allocation2 + $0x198] sm:$0xff]
    %v206 = vld [vmem:[#allocation2 + $0x1a0] sm:$0xff]
    %v207 = vld [vmem:[#allocation2 + $0x1a8] sm:$0xff]
    %v208 = vld [vmem:[#allocation2 + $0x1b0] sm:$0xff]
    %v209 = vld [vmem:[#allocation2 + $0x1b8] sm:$0xff]
    %v210 = vld [vmem:[#allocation2 + $0x1c0] sm:$0xff]
    %v211 = vld [vmem:[#allocation2 + $0x1c8] sm:$0xff]
    %v212 = vld [vmem:[#allocation2 + $0x1d0] sm:$0xff]
    %v213 = vld [vmem:[#allocation2 + $0x1d8] sm:$0xff]
    %v214 = vld [vmem:[#allocation2 + $0x1e0] sm:$0xff]
    %v215 = vld [vmem:[#allocation2 + $0x1e8] sm:$0xff]
    %v216 = vld [vmem:[#allocation2 + $0x1f0] sm:$0xff]
    %v217 = vld [vmem:[#allocation2 + $0x1f8] sm:$0xff]
    %v218 = vld [vmem:[#allocation2 + $0x200] sm:$0xff]
    %v219 = vld [vmem:[#allocation2 + $0x208] sm:$0xff]
    %v220 = vld [vmem:[#allocation2 + $0x210] sm:$0xff]
    %v221 = vld [vmem:[#allocation2 + $0x218] sm:$0xff]
    %v222 = vld [vmem:[#allocation2 + $0x220] sm:$0xff]
    %v223 = vld [vmem:[#allocation2 + $0x228] sm:$0xff]
    %v224 = vld [vmem:[#allocation2 + $0x230] sm:$0xff]
    %v225 = vld [vmem:[#allocation2 + $0x238] sm:$0xff]
    %v226 = vld [vmem:[#allocation2 + $0x240] sm:$0xff]
    %v227 = vld [vmem:[#allocation2 + $0x248] sm:$0xff]
    %v228 = vld [vmem:[#allocation2 + $0x250] sm:$0xff]
    %v229 = vld [vmem:[#allocation2 + $0x258] sm:$0xff]
    %v230 = vld [vmem:[#allocation2 + $0x260] sm:$0xff]
    %v231 = vld [vmem:[#allocation2 + $0x268] sm:$0xff]
    %v232 = vld [vmem:[#allocation2 + $0x270] sm:$0xff]
    %v233 = vld [vmem:[#allocation2 + $0x278] sm:$0xff]
    %v234 = vld [vmem:[#allocation2 + $0x280] sm:$0xff]
    %v235 = vld [vmem:[#allocation2 + $0x288] sm:$0xff]
    %v236 = vld [vmem:[#allocation2 + $0x290] sm:$0xff]
    %v237 = vld [vmem:[#allocation2 + $0x298] sm:$0xff]
    %v238 = vld [vmem:[#allocation2 + $0x2a0] sm:$0xff]
    %v239 = vld [vmem:[#allocation2 + $0x2a8] sm:$0xff]
    %v240 = vld [vmem:[#allocation2 + $0x2b0] sm:$0xff]
    %v241 = vld [vmem:[#allocation2 + $0x2b8] sm:$0xff]
    %v242 = vld [vmem:[#allocation2 + $0x2c0] sm:$0xff]
    %v243 = vld [vmem:[#allocation2 + $0x2c8] sm:$0xff]
    %v244 = vld [vmem:[#allocation2 + $0x2d0] sm:$0xff]
    %v245 = vld [vmem:[#allocation2 + $0x2d8] sm:$0xff]
    %v246 = vld [vmem:[#allocation2 + $0x2e0] sm:$0xff]
    %v247 = vld [vmem:[#allocation2 + $0x2e8] sm:$0xff]
    %v248 = vld [vmem:[#allocation2 + $0x2f0] sm:$0xff]
    %v249 = vld [vmem:[#allocation2 + $0x2f8] sm:$0xff]
    %v250 = vld [vmem:[#allocation3] sm:$0xff]
    %v251 = vld [vmem:[#allocation3 + $0x8] sm:$0xff]
    %v252 = vld [vmem:[#allocation3 + $0x10] sm:$0xff]
    %v253 = vld [vmem:[#allocation3 + $0x18] sm:$0xff]
    %v254 = vld [vmem:[#allocation3 + $0x20] sm:$0xff]
    %v255 = vld [vmem:[#allocation3 + $0x28] sm:$0xff]
    %v256 = vld [vmem:[#allocation3 + $0x30] sm:$0xff]
    %v257 = vld [vmem:[#allocation3 + $0x38] sm:$0xff]
    %v258 = vld [vmem:[#allocation3 + $0x40] sm:$0xff]
    %v259 = vld [vmem:[#allocation3 + $0x48] sm:$0xff]
    %v260 = vld [vmem:[#allocation3 + $0x50] sm:$0xff]
    %v261 = vld [vmem:[#allocation3 + $0x58] sm:$0xff]
    %v262 = vld [vmem:[#allocation3 + $0x60] sm:$0xff]
    %v263 = vld [vmem:[#allocation3 + $0x68] sm:$0xff]
    %v264 = vld [vmem:[#allocation3 + $0x70] sm:$0xff]
    %v265 = vld [vmem:[#allocation3 + $0x78] sm:$0xff]
    %v266 = vld [vmem:[#allocation3 + $0x80] sm:$0xff]
    %v267 = vld [vmem:[#allocation3 + $0x88] sm:$0xff]
    %v268 = vld [vmem:[#allocation3 + $0x90] sm:$0xff]
    %v269 = vld [vmem:[#allocation3 + $0x98] sm:$0xff]
    %v270 = vld [vmem:[#allocation3 + $0xa0] sm:$0xff]
    %v271 = vld [vmem:[#allocation3 + $0xa8] sm:$0xff]
    %v272 = vld [vmem:[#allocation3 + $0xb0] sm:$0xff]
    %v273 = vld [vmem:[#allocation3 + $0xb8] sm:$0xff]
    %v274 = vld [vmem:[#allocation3 + $0xc0] sm:$0xff]
    %v275 = vld [vmem:[#allocation3 + $0xc8] sm:$0xff]
    %v276 = vld [vmem:[#allocation3 + $0xd0] sm:$0xff]
    %v277 = vld [vmem:[#allocation3 + $0xd8] sm:$0xff]
    %v278 = vld [vmem:[#allocation3 + $0xe0] sm:$0xff]
    %v279 = vld [vmem:[#allocation3 + $0xe8] sm:$0xff]
    %v280 = vld [vmem:[#allocation3 + $0xf0] sm:$0xff]
    %v281 = vld [vmem:[#allocation3 + $0xf8] sm:$0xff]
    %v282 = vld [vmem:[#allocation3 + $0x100] sm:$0xff]
    %v283 = vld [vmem:[#allocation3 + $0x108] sm:$0xff]
    %v284 = vld [vmem:[#allocation3 + $0x110] sm:$0xff]
    %v285 = vld [vmem:[#allocation3 + $0x118] sm:$0xff]
    %v286 = vld [vmem:[#allocation3 + $0x120] sm:$0xff]
    %v287 = vld [vmem:[#allocation3 + $0x128] sm:$0xff]
    %v288 = vld [vmem:[#allocation3 + $0x130] sm:$0xff]
    %v289 = vld [vmem:[#allocation3 + $0x138] sm:$0xff]
    %v290 = vld [vmem:[#allocation3 + $0x140] sm:$0xff]
    %v291 = vld [vmem:[#allocation3 + $0x148] sm:$0xff]
    %v292 = vld [vmem:[#allocation3 + $0x150] sm:$0xff]
    %v293 = vld [vmem:[#allocation3 + $0x158] sm:$0xff]
    %v294 = vld [vmem:[#allocation3 + $0x160] sm:$0xff]
    %v295 = vld [vmem:[#allocation3 + $0x168] sm:$0xff]
    %v296 = vld [vmem:[#allocation3 + $0x170] sm:$0xff]
    %v297 = vld [vmem:[#allocation3 + $0x178] sm:$0xff]
    %v298 = vld [vmem:[#allocation6] sm:$0xff]
    %v299 = vld [vmem:[#allocation6 + $0x8] sm:$0xff]
    %v300 = vld [vmem:[#allocation6 + $0x10] sm:$0xff]
    %v301 = vld [vmem:[#allocation6 + $0x18] sm:$0xff]
    %v302 = vld [vmem:[#allocation6 + $0x20] sm:$0xff]
    %v303 = vld [vmem:[#allocation6 + $0x28] sm:$0xff]
    %v304 = vld [vmem:[#allocation6 + $0x30] sm:$0xff]
    %v305 = vld [vmem:[#allocation6 + $0x38] sm:$0xff]
    %v306 = vld [vmem:[#allocation6 + $0x40] sm:$0xff]
    %v307 = vld [vmem:[#allocation6 + $0x48] sm:$0xff]
    %v308 = vld [vmem:[#allocation6 + $0x50] sm:$0xff]
    %v309 = vld [vmem:[#allocation6 + $0x58] sm:$0xff]
    %v310 = vld [vmem:[#allocation6 + $0x60] sm:$0xff]
    %v311 = vld [vmem:[#allocation6 + $0x68] sm:$0xff]
    %v312 = vld [vmem:[#allocation6 + $0x70] sm:$0xff]
    %v313 = vld [vmem:[#allocation6 + $0x78] sm:$0xff]
    %v314 = vld [vmem:[#allocation6 + $0x80] sm:$0xff]
    %v315 = vld [vmem:[#allocation6 + $0x88] sm:$0xff]
    %v316 = vld [vmem:[#allocation6 + $0x90] sm:$0xff]
    %v317 = vld [vmem:[#allocation6 + $0x98] sm:$0xff]
    %v318 = vld [vmem:[#allocation6 + $0xa0] sm:$0xff]
    %v319 = vld [vmem:[#allocation6 + $0xa8] sm:$0xff]
    %v320 = vld [vmem:[#allocation6 + $0xb0] sm:$0xff]
    %v321 = vld [vmem:[#allocation6 + $0xb8] sm:$0xff]
    %v322 = vld [vmem:[#allocation6 + $0xc0] sm:$0xff]
    %v323 = vld [vmem:[#allocation6 + $0xc8] sm:$0xff]
    %v324 = vld [vmem:[#allocation6 + $0xd0] sm:$0xff]
    %v325 = vld [vmem:[#allocation6 + $0xd8] sm:$0xff]
    %v326 = vld [vmem:[#allocation6 + $0xe0] sm:$0xff]
    %v327 = vld [vmem:[#allocation6 + $0xe8] sm:$0xff]
    %v328 = vld [vmem:[#allocation6 + $0xf0] sm:$0xff]
    %v329 = vld [vmem:[#allocation6 + $0xf8] sm:$0xff]
    %vm330 = vcmask 31744
    %v332 = vsel %vm330, %v250, 0
    %v335 = vsel %vm330, %v251, 0
    %v338 = vsel %vm330, %v252, 0
    %v341 = vsel %vm330, %v253, 0
    %v344 = vsel %vm330, %v254, 0
    %v347 = vsel %vm330, %v255, 0
    %v350 = vsel %vm330, %v256, 0
    %v353 = vsel %vm330, %v257, 0
    %v356 = vsel %vm330, %v258, 0
    %v359 = vsel %vm330, %v259, 0
    %v362 = vsel %vm330, %v260, 0
    %v365 = vsel %vm330, %v261, 0
    %v368 = vsel %vm330, %v262, 0
    %v371 = vsel %vm330, %v263, 0
    %v374 = vsel %vm330, %v264, 0
    %v377 = vsel %vm330, %v265, 0
    %v380 = vsel %vm330, %v266, 0
    %v383 = vsel %vm330, %v267, 0
    %v386 = vsel %vm330, %v268, 0
    %v389 = vsel %vm330, %v269, 0
    %v392 = vsel %vm330, %v270, 0
    %v395 = vsel %vm330, %v271, 0
    %v398 = vsel %vm330, %v272, 0
    %v401 = vsel %vm330, %v273, 0
    %v404 = vsel %vm330, %v274, 0
    %v407 = vsel %vm330, %v275, 0
    %v410 = vsel %vm330, %v276, 0
    %v413 = vsel %vm330, %v277, 0
    %v416 = vsel %vm330, %v278, 0
    %v419 = vsel %vm330, %v279, 0
    %v422 = vsel %vm330, %v280, 0
    %v425 = vsel %vm330, %v281, 0
    %v428 = vsel %vm330, %v282, 0
    %v431 = vsel %vm330, %v283, 0
    %v434 = vsel %vm330, %v284, 0
    %v437 = vsel %vm330, %v285, 0
    %v440 = vsel %vm330, %v286, 0
    %v443 = vsel %vm330, %v287, 0
    %v446 = vsel %vm330, %v288, 0
    %v449 = vsel %vm330, %v289, 0
    %v452 = vsel %vm330, %v290, 0
    %v455 = vsel %vm330, %v291, 0
    %v458 = vsel %vm330, %v292, 0
    %v461 = vsel %vm330, %v293, 0
    %v464 = vsel %vm330, %v294, 0
    %v467 = vsel %vm330, %v295, 0
    %v470 = vsel %vm330, %v296, 0
    %v473 = vsel %vm330, %v297, 0
    %v476 = vsel %vm330, %v298, 0
    %v479 = vsel %vm330, %v299, 0
    %v482 = vsel %vm330, %v300, 0
    %v485 = vsel %vm330, %v301, 0
    %v488 = vsel %vm330, %v302, 0
    %v491 = vsel %vm330, %v303, 0
    %v494 = vsel %vm330, %v304, 0
    %v497 = vsel %vm330, %v305, 0
    %v500 = vsel %vm330, %v306, 0
    %v503 = vsel %vm330, %v307, 0
    %v506 = vsel %vm330, %v308, 0
    %v509 = vsel %vm330, %v309, 0
    %v512 = vsel %vm330, %v310, 0
    %v515 = vsel %vm330, %v311, 0
    %v518 = vsel %vm330, %v312, 0
    %v521 = vsel %vm330, %v313, 0
    %v524 = vsel %vm330, %v314, 0
    %v527 = vsel %vm330, %v315, 0
    %v530 = vsel %vm330, %v316, 0
    %v533 = vsel %vm330, %v317, 0
    %v536 = vsel %vm330, %v318, 0
    %v539 = vsel %vm330, %v319, 0
    %v542 = vsel %vm330, %v320, 0
    %v545 = vsel %vm330, %v321, 0
    %v548 = vsel %vm330, %v322, 0
    %v551 = vsel %vm330, %v323, 0
    %v554 = vsel %vm330, %v324, 0
    %v557 = vsel %vm330, %v325, 0
    %v560 = vsel %vm330, %v326, 0
    %v563 = vsel %vm330, %v327, 0
    %v566 = vsel %vm330, %v328, 0
    %v569 = vsel %vm330, %v329, 0
    %571 = vmatprep.subr.mxu0 0.0
    %572 = vmatpush1.xpose.msra.mxu0 %v476
    %573 = vmatprep.subr.mxu0 0.0
    %574 = vmatpush1.xpose.msra.mxu0 %v479
    %575 = vmatprep.subr.mxu0 0.0
    %576 = vmatpush1.xpose.msra.mxu0 %v482
    %577 = vmatprep.subr.mxu0 0.0
    %578 = vmatpush1.xpose.msra.mxu0 %v485
    %579 = vmatprep.subr.mxu0 0.0
    %580 = vmatpush1.xpose.msra.mxu0 %v488
    %581 = vmatprep.subr.mxu0 0.0
    %582 = vmatpush1.xpose.msra.mxu0 %v491
    %583 = vmatprep.subr.mxu0 0.0
    %584 = vmatpush1.xpose.msra.mxu0 %v494
    %585 = vmatprep.subr.mxu0 0.0
    %586 = vmatpush1.xpose.msra.mxu0 %v497
    %587 = vmatprep.subr.mxu0 0.0
    %588 = vmatpush1.xpose.msra.mxu0 %v500
    %589 = vmatprep.subr.mxu0 0.0
    %590 = vmatpush1.xpose.msra.mxu0 %v503
    %591 = vmatprep.subr.mxu0 0.0
    %592 = vmatpush1.xpose.msra.mxu0 %v506
    %593 = vmatprep.subr.mxu0 0.0
    %594 = vmatpush1.xpose.msra.mxu0 %v509
    %595 = vmatprep.subr.mxu0 0.0
    %596 = vmatpush1.xpose.msra.mxu0 %v512
    %597 = vmatprep.subr.mxu0 0.0
    %598 = vmatpush1.xpose.msra.mxu0 %v515
    %599 = vmatprep.subr.mxu0 0.0
    %600 = vmatpush1.xpose.msra.mxu0 %v518
    %601 = vmatprep.subr.mxu0 0.0
    %602 = vmatpush1.xpose.msra.mxu0 %v521
    %603 = vmatprep.subr.mxu0 0.0
    %604 = vmatpush1.xpose.msra.mxu0 %v524
    %605 = vmatprep.subr.mxu0 0.0
    %606 = vmatpush1.xpose.msra.mxu0 %v527
    %607 = vmatprep.subr.mxu0 0.0
    %608 = vmatpush1.xpose.msra.mxu0 %v530
    %609 = vmatprep.subr.mxu0 0.0
    %610 = vmatpush1.xpose.msra.mxu0 %v533
    %611 = vmatprep.subr.mxu0 0.0
    %612 = vmatpush1.xpose.msra.mxu0 %v536
    %613 = vmatprep.subr.mxu0 0.0
    %614 = vmatpush1.xpose.msra.mxu0 %v539
    %615 = vmatprep.subr.mxu0 0.0
    %616 = vmatpush1.xpose.msra.mxu0 %v542
    %617 = vmatprep.subr.mxu0 0.0
    %618 = vmatpush1.xpose.msra.mxu0 %v545
    %619 = vmatprep.subr.mxu0 0.0
    %620 = vmatpush1.xpose.msra.mxu0 %v548
    %621 = vmatprep.subr.mxu0 0.0
    %622 = vmatpush1.xpose.msra.mxu0 %v551
    %623 = vmatprep.subr.mxu0 0.0
    %624 = vmatpush1.xpose.msra.mxu0 %v554
    %625 = vmatprep.subr.mxu0 0.0
    %626 = vmatpush1.xpose.msra.mxu0 %v557
    %627 = vmatprep.subr.mxu0 0.0
    %628 = vmatpush1.xpose.msra.mxu0 %v560
    %629 = vmatprep.subr.mxu0 0.0
    %630 = vmatpush1.xpose.msra.mxu0 %v563
    %631 = vmatprep.subr.mxu0 0.0
    %632 = vmatpush1.xpose.msra.mxu0 %v566
    %633 = vmatprep.subr.mxu0 0.0
    %634 = vmatpush1.xpose.msra.mxu0 %v569
    %635 = vmatprep.mubr.f32.mxu0 0.0
    %636 = vmatmul.mubr.f32.gmra.mrb[0].mxu0 %v332
    %v637 = vpop.f32.mrb[0].mxu0
    %v638 = vadd.f32 0.0, %v637
    %v639 = vpop.f32.mrb[0].mxu0
    %v640 = vadd.f32 0.0, %v639
    %641 = vmatprep.mubr.f32.mxu0 0.0
    %642 = vmatmul.mubr.f32.gmra.mrb[0].mxu0 %v335
    %v643 = vpop.f32.mrb[0].mxu0
    %v644 = vadd.f32 0.0, %v643
    %v645 = vpop.f32.mrb[0].mxu0
    %v646 = vadd.f32 0.0, %v645
    %647 = vmatprep.mubr.f32.mxu0 0.0
    %648 = vmatmul.mubr.f32.gmra.mrb[0].mxu0 %v338
    %v649 = vpop.f32.mrb[0].mxu0
    %v650 = vadd.f32 0.0, %v649
    %v651 = vpop.f32.mrb[0].mxu0
    %v652 = vadd.f32 0.0, %v651
    %653 = vmatprep.mubr.f32.mxu0 0.0
    %654 = vmatmul.mubr.f32.gmra.mrb[0].mxu0 %v341
    %v655 = vpop.f32.mrb[0].mxu0
    %v656 = vadd.f32 0.0, %v655
    %v657 = vpop.f32.mrb[0].mxu0
    %v658 = vadd.f32 0.0, %v657
    %659 = vmatprep.mubr.f32.mxu0 0.0
    %660 = vmatmul.mubr.f32.gmra.mrb[0].mxu0 %v344
    %v661 = vpop.f32.mrb[0].mxu0
    %v662 = vadd.f32 0.0, %v661
    %v663 = vpop.f32.mrb[0].mxu0
    %v664 = vadd.f32 0.0, %v663
    %665 = vmatprep.mubr.f32.mxu0 0.0
    %666 = vmatmul.mubr.f32.gmra.mrb[0].mxu0 %v347
    %v667 = vpop.f32.mrb[0].mxu0
    %v668 = vadd.f32 0.0, %v667
    %v669 = vpop.f32.mrb[0].mxu0
    %v670 = vadd.f32 0.0, %v669
    %671 = vmatprep.mubr.f32.mxu0 0.0
    %672 = vmatmul.mubr.f32.gmra.mrb[0].mxu0 %v350
    %v673 = vpop.f32.mrb[0].mxu0
    %v674 = vadd.f32 0.0, %v673
    %v675 = vpop.f32.mrb[0].mxu0
    %v676 = vadd.f32 0.0, %v675
    %677 = vmatprep.mubr.f32.mxu0 0.0
    %678 = vmatmul.mubr.f32.gmra.mrb[0].mxu0 %v353
    %v679 = vpop.f32.mrb[0].mxu0
    %v680 = vadd.f32 0.0, %v679
    %v681 = vpop.f32.mrb[0].mxu0
    %v682 = vadd.f32 0.0, %v681
    %683 = vmatprep.mubr.f32.mxu0 0.0
    %684 = vmatmul.mubr.f32.gmra.mrb[0].mxu0 %v356
    %v685 = vpop.f32.mrb[0].mxu0
    %v686 = vadd.f32 0.0, %v685
    %v687 = vpop.f32.mrb[0].mxu0
    %v688 = vadd.f32 0.0, %v687
    %689 = vmatprep.mubr.f32.mxu0 0.0
    %690 = vmatmul.mubr.f32.gmra.mrb[0].mxu0 %v359
    %v691 = vpop.f32.mrb[0].mxu0
    %v692 = vadd.f32 0.0, %v691
    %v693 = vpop.f32.mrb[0].mxu0
    %v694 = vadd.f32 0.0, %v693
    %695 = vmatprep.mubr.f32.mxu0 0.0
    %696 = vmatmul.mubr.f32.gmra.mrb[0].mxu0 %v362
    %v697 = vpop.f32.mrb[0].mxu0
    %v698 = vadd.f32 0.0, %v697
    %v699 = vpop.f32.mrb[0].mxu0
    %v700 = vadd.f32 0.0, %v699
    %701 = vmatprep.mubr.f32.mxu0 0.0
    %702 = vmatmul.mubr.f32.gmra.mrb[0].mxu0 %v365
    %v703 = vpop.f32.mrb[0].mxu0
    %v704 = vadd.f32 0.0, %v703
    %v705 = vpop.f32.mrb[0].mxu0
    %v706 = vadd.f32 0.0, %v705
    %707 = vmatprep.mubr.f32.mxu0 0.0
    %708 = vmatmul.mubr.f32.gmra.mrb[0].mxu0 %v368
    %v709 = vpop.f32.mrb[0].mxu0
    %v710 = vadd.f32 0.0, %v709
    %v711 = vpop.f32.mrb[0].mxu0
    %v712 = vadd.f32 0.0, %v711
    %713 = vmatprep.mubr.f32.mxu0 0.0
    %714 = vmatmul.mubr.f32.gmra.mrb[0].mxu0 %v371
    %v715 = vpop.f32.mrb[0].mxu0
    %v716 = vadd.f32 0.0, %v715
    %v717 = vpop.f32.mrb[0].mxu0
    %v718 = vadd.f32 0.0, %v717
    %719 = vmatprep.mubr.f32.mxu0 0.0
    %720 = vmatmul.mubr.f32.gmra.mrb[0].mxu0 %v374
    %v721 = vpop.f32.mrb[0].mxu0
    %v722 = vadd.f32 0.0, %v721
    %v723 = vpop.f32.mrb[0].mxu0
    %v724 = vadd.f32 0.0, %v723
    %725 = vmatprep.mubr.f32.mxu0 0.0
    %726 = vmatmul.mubr.f32.gmra.mrb[0].mxu0 %v377
    %v727 = vpop.f32.mrb[0].mxu0
    %v728 = vadd.f32 0.0, %v727
    %v729 = vpop.f32.mrb[0].mxu0
    %v730 = vadd.f32 0.0, %v729
    %731 = vmatprep.mubr.f32.mxu0 0.0
    %732 = vmatmul.mubr.f32.gmra.mrb[0].mxu0 %v380
    %v733 = vpop.f32.mrb[0].mxu0
    %v734 = vadd.f32 0.0, %v733
    %v735 = vpop.f32.mrb[0].mxu0
    %v736 = vadd.f32 0.0, %v735
    %737 = vmatprep.mubr.f32.mxu0 0.0
    %738 = vmatmul.mubr.f32.gmra.mrb[0].mxu0 %v383
    %v739 = vpop.f32.mrb[0].mxu0
    %v740 = vadd.f32 0.0, %v739
    %v741 = vpop.f32.mrb[0].mxu0
    %v742 = vadd.f32 0.0, %v741
    %743 = vmatprep.mubr.f32.mxu0 0.0
    %744 = vmatmul.mubr.f32.gmra.mrb[0].mxu0 %v386
    %v745 = vpop.f32.mrb[0].mxu0
    %v746 = vadd.f32 0.0, %v745
    %v747 = vpop.f32.mrb[0].mxu0
    %v748 = vadd.f32 0.0, %v747
    %749 = vmatprep.mubr.f32.mxu0 0.0
    %750 = vmatmul.mubr.f32.gmra.mrb[0].mxu0 %v389
    %v751 = vpop.f32.mrb[0].mxu0
    %v752 = vadd.f32 0.0, %v751
    %v753 = vpop.f32.mrb[0].mxu0
    %v754 = vadd.f32 0.0, %v753
    %755 = vmatprep.mubr.f32.mxu0 0.0
    %756 = vmatmul.mubr.f32.gmra.mrb[0].mxu0 %v392
    %v757 = vpop.f32.mrb[0].mxu0
    %v758 = vadd.f32 0.0, %v757
    %v759 = vpop.f32.mrb[0].mxu0
    %v760 = vadd.f32 0.0, %v759
    %761 = vmatprep.mubr.f32.mxu0 0.0
    %762 = vmatmul.mubr.f32.gmra.mrb[0].mxu0 %v395
    %v763 = vpop.f32.mrb[0].mxu0
    %v764 = vadd.f32 0.0, %v763
    %v765 = vpop.f32.mrb[0].mxu0
    %v766 = vadd.f32 0.0, %v765
    %767 = vmatprep.mubr.f32.mxu0 0.0
    %768 = vmatmul.mubr.f32.gmra.mrb[0].mxu0 %v398
    %v769 = vpop.f32.mrb[0].mxu0
    %v770 = vadd.f32 0.0, %v769
    %v771 = vpop.f32.mrb[0].mxu0
    %v772 = vadd.f32 0.0, %v771
    %773 = vmatprep.mubr.f32.mxu0 0.0
    %774 = vmatmul.mubr.f32.gmra.mrb[0].mxu0 %v401
    %v775 = vpop.f32.mrb[0].mxu0
    %v776 = vadd.f32 0.0, %v775
    %v777 = vpop.f32.mrb[0].mxu0
    %v778 = vadd.f32 0.0, %v777
    %779 = vmatprep.mubr.f32.mxu0 0.0
    %780 = vmatmul.mubr.f32.gmra.mrb[0].mxu0 %v404
    %v781 = vpop.f32.mrb[0].mxu0
    %v782 = vadd.f32 0.0, %v781
    %v783 = vpop.f32.mrb[0].mxu0
    %v784 = vadd.f32 0.0, %v783
    %785 = vmatprep.mubr.f32.mxu0 0.0
    %786 = vmatmul.mubr.f32.gmra.mrb[0].mxu0 %v407
    %v787 = vpop.f32.mrb[0].mxu0
    %v788 = vadd.f32 0.0, %v787
    %v789 = vpop.f32.mrb[0].mxu0
    %v790 = vadd.f32 0.0, %v789
    %791 = vmatprep.mubr.f32.mxu0 0.0
    %792 = vmatmul.mubr.f32.gmra.mrb[0].mxu0 %v410
    %v793 = vpop.f32.mrb[0].mxu0
    %v794 = vadd.f32 0.0, %v793
    %v795 = vpop.f32.mrb[0].mxu0
    %v796 = vadd.f32 0.0, %v795
    %797 = vmatprep.mubr.f32.mxu0 0.0
    %798 = vmatmul.mubr.f32.gmra.mrb[0].mxu0 %v413
    %v799 = vpop.f32.mrb[0].mxu0
    %v800 = vadd.f32 0.0, %v799
    %v801 = vpop.f32.mrb[0].mxu0
    %v802 = vadd.f32 0.0, %v801
    %803 = vmatprep.mubr.f32.mxu0 0.0
    %804 = vmatmul.mubr.f32.gmra.mrb[0].mxu0 %v416
    %v805 = vpop.f32.mrb[0].mxu0
    %v806 = vadd.f32 0.0, %v805
    %v807 = vpop.f32.mrb[0].mxu0
    %v808 = vadd.f32 0.0, %v807
    %809 = vmatprep.mubr.f32.mxu0 0.0
    %810 = vmatmul.mubr.f32.gmra.mrb[0].mxu0 %v419
    %v811 = vpop.f32.mrb[0].mxu0
    %v812 = vadd.f32 0.0, %v811
    %v813 = vpop.f32.mrb[0].mxu0
    %v814 = vadd.f32 0.0, %v813
    %815 = vmatprep.mubr.f32.mxu0 0.0
    %816 = vmatmul.mubr.f32.gmra.mrb[0].mxu0 %v422
    %v817 = vpop.f32.mrb[0].mxu0
    %v818 = vadd.f32 0.0, %v817
    %v819 = vpop.f32.mrb[0].mxu0
    %v820 = vadd.f32 0.0, %v819
    %821 = vmatprep.mubr.f32.mxu0 0.0
    %822 = vmatmul.mubr.f32.gmra.mrb[0].mxu0 %v425
    %v823 = vpop.f32.mrb[0].mxu0
    %v824 = vadd.f32 0.0, %v823
    %v825 = vpop.f32.mrb[0].mxu0
    %v826 = vadd.f32 0.0, %v825
    %827 = vmatprep.mubr.f32.mxu0 0.0
    %828 = vmatmul.mubr.f32.gmra.mrb[0].mxu0 %v428
    %v829 = vpop.f32.mrb[0].mxu0
    %v830 = vadd.f32 0.0, %v829
    %v831 = vpop.f32.mrb[0].mxu0
    %v832 = vadd.f32 0.0, %v831
    %833 = vmatprep.mubr.f32.mxu0 0.0
    %834 = vmatmul.mubr.f32.gmra.mrb[0].mxu0 %v431
    %v835 = vpop.f32.mrb[0].mxu0
    %v836 = vadd.f32 0.0, %v835
    %v837 = vpop.f32.mrb[0].mxu0
    %v838 = vadd.f32 0.0, %v837
    %839 = vmatprep.mubr.f32.mxu0 0.0
    %840 = vmatmul.mubr.f32.gmra.mrb[0].mxu0 %v434
    %v841 = vpop.f32.mrb[0].mxu0
    %v842 = vadd.f32 0.0, %v841
    %v843 = vpop.f32.mrb[0].mxu0
    %v844 = vadd.f32 0.0, %v843
    %845 = vmatprep.mubr.f32.mxu0 0.0
    %846 = vmatmul.mubr.f32.gmra.mrb[0].mxu0 %v437
    %v847 = vpop.f32.mrb[0].mxu0
    %v848 = vadd.f32 0.0, %v847
    %v849 = vpop.f32.mrb[0].mxu0
    %v850 = vadd.f32 0.0, %v849
    %851 = vmatprep.mubr.f32.mxu0 0.0
    %852 = vmatmul.mubr.f32.gmra.mrb[0].mxu0 %v440
    %v853 = vpop.f32.mrb[0].mxu0
    %v854 = vadd.f32 0.0, %v853
    %v855 = vpop.f32.mrb[0].mxu0
    %v856 = vadd.f32 0.0, %v855
    %857 = vmatprep.mubr.f32.mxu0 0.0
    %858 = vmatmul.mubr.f32.gmra.mrb[0].mxu0 %v443
    %v859 = vpop.f32.mrb[0].mxu0
    %v860 = vadd.f32 0.0, %v859
    %v861 = vpop.f32.mrb[0].mxu0
    %v862 = vadd.f32 0.0, %v861
    %863 = vmatprep.mubr.f32.mxu0 0.0
    %864 = vmatmul.mubr.f32.gmra.mrb[0].mxu0 %v446
    %v865 = vpop.f32.mrb[0].mxu0
    %v866 = vadd.f32 0.0, %v865
    %v867 = vpop.f32.mrb[0].mxu0
    %v868 = vadd.f32 0.0, %v867
    %869 = vmatprep.mubr.f32.mxu0 0.0
    %870 = vmatmul.mubr.f32.gmra.mrb[0].mxu0 %v449
    %v871 = vpop.f32.mrb[0].mxu0
    %v872 = vadd.f32 0.0, %v871
    %v873 = vpop.f32.mrb[0].mxu0
    %v874 = vadd.f32 0.0, %v873
    %875 = vmatprep.mubr.f32.mxu0 0.0
    %876 = vmatmul.mubr.f32.gmra.mrb[0].mxu0 %v452
    %v877 = vpop.f32.mrb[0].mxu0
    %v878 = vadd.f32 0.0, %v877
    %v879 = vpop.f32.mrb[0].mxu0
    %v880 = vadd.f32 0.0, %v879
    %881 = vmatprep.mubr.f32.mxu0 0.0
    %882 = vmatmul.mubr.f32.gmra.mrb[0].mxu0 %v455
    %v883 = vpop.f32.mrb[0].mxu0
    %v884 = vadd.f32 0.0, %v883
    %v885 = vpop.f32.mrb[0].mxu0
    %v886 = vadd.f32 0.0, %v885
    %887 = vmatprep.mubr.f32.mxu0 0.0
    %888 = vmatmul.mubr.f32.gmra.mrb[0].mxu0 %v458
    %v889 = vpop.f32.mrb[0].mxu0
    %v890 = vadd.f32 0.0, %v889
    %v891 = vpop.f32.mrb[0].mxu0
    %v892 = vadd.f32 0.0, %v891
    %893 = vmatprep.mubr.f32.mxu0 0.0
    %894 = vmatmul.mubr.f32.gmra.mrb[0].mxu0 %v461
    %v895 = vpop.f32.mrb[0].mxu0
    %v896 = vadd.f32 0.0, %v895
    %v897 = vpop.f32.mrb[0].mxu0
    %v898 = vadd.f32 0.0, %v897
    %899 = vmatprep.mubr.f32.mxu0 0.0
    %900 = vmatmul.mubr.f32.gmra.mrb[0].mxu0 %v464
    %v901 = vpop.f32.mrb[0].mxu0
    %v902 = vadd.f32 0.0, %v901
    %v903 = vpop.f32.mrb[0].mxu0
    %v904 = vadd.f32 0.0, %v903
    %905 = vmatprep.mubr.f32.mxu0 0.0
    %906 = vmatmul.mubr.f32.gmra.mrb[0].mxu0 %v467
    %v907 = vpop.f32.mrb[0].mxu0
    %v908 = vadd.f32 0.0, %v907
    %v909 = vpop.f32.mrb[0].mxu0
    %v910 = vadd.f32 0.0, %v909
    %911 = vmatprep.mubr.f32.mxu0 0.0
    %912 = vmatmul.mubr.f32.gmra.mrb[0].mxu0 %v470
    %v913 = vpop.f32.mrb[0].mxu0
    %v914 = vadd.f32 0.0, %v913
    %v915 = vpop.f32.mrb[0].mxu0
    %v916 = vadd.f32 0.0, %v915
    %917 = vmatprep.mubr.f32.mxu0 0.0
    %918 = vmatmul.mubr.f32.gmra.mrb[0].mxu0 %v473
    %v919 = vpop.f32.mrb[0].mxu0
    %v920 = vadd.f32 0.0, %v919
    %v921 = vpop.f32.mrb[0].mxu0
    %v922 = vadd.f32 0.0, %v921
    %923 = vdwg.mxu0
    %v924 = vadd.f32 %v154, %v638
    %v925 = vadd.f32 %v155, %v640
    %v926 = vadd.f32 %v156, %v644
    %v927 = vadd.f32 %v157, %v646
    %v928 = vadd.f32 %v158, %v650
    %v929 = vadd.f32 %v159, %v652
    %v930 = vadd.f32 %v160, %v656
    %v931 = vadd.f32 %v161, %v658
    %v932 = vadd.f32 %v162, %v662
    %v933 = vadd.f32 %v163, %v664
    %v934 = vadd.f32 %v164, %v668
    %v935 = vadd.f32 %v165, %v670
    %v936 = vadd.f32 %v166, %v674
    %v937 = vadd.f32 %v167, %v676
    %v938 = vadd.f32 %v168, %v680
    %v939 = vadd.f32 %v169, %v682
    %v940 = vadd.f32 %v170, %v686
    %v941 = vadd.f32 %v171, %v688
    %v942 = vadd.f32 %v172, %v692
    %v943 = vadd.f32 %v173, %v694
    %v944 = vadd.f32 %v174, %v698
    %v945 = vadd.f32 %v175, %v700
    %v946 = vadd.f32 %v176, %v704
    %v947 = vadd.f32 %v177, %v706
    %v948 = vadd.f32 %v178, %v710
    %v949 = vadd.f32 %v179, %v712
    %v950 = vadd.f32 %v180, %v716
    %v951 = vadd.f32 %v181, %v718
    %v952 = vadd.f32 %v182, %v722
    %v953 = vadd.f32 %v183, %v724
    %v954 = vadd.f32 %v184, %v728
    %v955 = vadd.f32 %v185, %v730
    %v956 = vadd.f32 %v186, %v734
    %v957 = vadd.f32 %v187, %v736
    %v958 = vadd.f32 %v188, %v740
    %v959 = vadd.f32 %v189, %v742
    %v960 = vadd.f32 %v190, %v746
    %v961 = vadd.f32 %v191, %v748
    %v962 = vadd.f32 %v192, %v752
    %v963 = vadd.f32 %v193, %v754
    %v964 = vadd.f32 %v194, %v758
    %v965 = vadd.f32 %v195, %v760
    %v966 = vadd.f32 %v196, %v764
    %v967 = vadd.f32 %v197, %v766
    %v968 = vadd.f32 %v198, %v770
    %v969 = vadd.f32 %v199, %v772
    %v970 = vadd.f32 %v200, %v776
    %v971 = vadd.f32 %v201, %v778
    %v972 = vadd.f32 %v202, %v782
    %v973 = vadd.f32 %v203, %v784
    %v974 = vadd.f32 %v204, %v788
    %v975 = vadd.f32 %v205, %v790
    %v976 = vadd.f32 %v206, %v794
    %v977 = vadd.f32 %v207, %v796
    %v978 = vadd.f32 %v208, %v800
    %v979 = vadd.f32 %v209, %v802
    %v980 = vadd.f32 %v210, %v806
    %v981 = vadd.f32 %v211, %v808
    %v982 = vadd.f32 %v212, %v812
    %v983 = vadd.f32 %v213, %v814
    %v984 = vadd.f32 %v214, %v818
    %v985 = vadd.f32 %v215, %v820
    %v986 = vadd.f32 %v216, %v824
    %v987 = vadd.f32 %v217, %v826
    %v988 = vadd.f32 %v218, %v830
    %v989 = vadd.f32 %v219, %v832
    %v990 = vadd.f32 %v220, %v836
    %v991 = vadd.f32 %v221, %v838
    %v992 = vadd.f32 %v222, %v842
    %v993 = vadd.f32 %v223, %v844
    %v994 = vadd.f32 %v224, %v848
    %v995 = vadd.f32 %v225, %v850
    %v996 = vadd.f32 %v226, %v854
    %v997 = vadd.f32 %v227, %v856
    %v998 = vadd.f32 %v228, %v860
    %v999 = vadd.f32 %v229, %v862
    %v1000 = vadd.f32 %v230, %v866
    %v1001 = vadd.f32 %v231, %v868
    %v1002 = vadd.f32 %v232, %v872
    %v1003 = vadd.f32 %v233, %v874
    %v1004 = vadd.f32 %v234, %v878
    %v1005 = vadd.f32 %v235, %v880
    %v1006 = vadd.f32 %v236, %v884
    %v1007 = vadd.f32 %v237, %v886
    %v1008 = vadd.f32 %v238, %v890
    %v1009 = vadd.f32 %v239, %v892
    %v1010 = vadd.f32 %v240, %v896
    %v1011 = vadd.f32 %v241, %v898
    %v1012 = vadd.f32 %v242, %v902
    %v1013 = vadd.f32 %v243, %v904
    %v1014 = vadd.f32 %v244, %v908
    %v1015 = vadd.f32 %v245, %v910
    %v1016 = vadd.f32 %v246, %v914
    %v1017 = vadd.f32 %v247, %v916
    %v1018 = vadd.f32 %v248, %v920
    %v1019 = vadd.f32 %v249, %v922
    %1020 = vst [vmem:[#allocation2] sm:$0xff] %v924
    %1021 = vst [vmem:[#allocation2 + $0x8] sm:$0xff] %v925
    %1022 = vst [vmem:[#allocation2 + $0x10] sm:$0xff] %v926
    %1023 = vst [vmem:[#allocation2 + $0x18] sm:$0xff] %v927
    %1024 = vst [vmem:[#allocation2 + $0x20] sm:$0xff] %v928
    %1025 = vst [vmem:[#allocation2 + $0x28] sm:$0xff] %v929
    %1026 = vst [vmem:[#allocation2 + $0x30] sm:$0xff] %v930
    %1027 = vst [vmem:[#allocation2 + $0x38] sm:$0xff] %v931
    %1028 = vst [vmem:[#allocation2 + $0x40] sm:$0xff] %v932
    %1029 = vst [vmem:[#allocation2 + $0x48] sm:$0xff] %v933
    %1030 = vst [vmem:[#allocation2 + $0x50] sm:$0xff] %v934
    %1031 = vst [vmem:[#allocation2 + $0x58] sm:$0xff] %v935
    %1032 = vst [vmem:[#allocation2 + $0x60] sm:$0xff] %v936
    %1033 = vst [vmem:[#allocation2 + $0x68] sm:$0xff] %v937
    %1034 = vst [vmem:[#allocation2 + $0x70] sm:$0xff] %v938
    %1035 = vst [vmem:[#allocation2 + $0x78] sm:$0xff] %v939
    %1036 = vst [vmem:[#allocation2 + $0x80] sm:$0xff] %v940
    %1037 = vst [vmem:[#allocation2 + $0x88] sm:$0xff] %v941
    %1038 = vst [vmem:[#allocation2 + $0x90] sm:$0xff] %v942
    %1039 = vst [vmem:[#allocation2 + $0x98] sm:$0xff] %v943
    %1040 = vst [vmem:[#allocation2 + $0xa0] sm:$0xff] %v944
    %1041 = vst [vmem:[#allocation2 + $0xa8] sm:$0xff] %v945
    %1042 = vst [vmem:[#allocation2 + $0xb0] sm:$0xff] %v946
    %1043 = vst [vmem:[#allocation2 + $0xb8] sm:$0xff] %v947
    %1044 = vst [vmem:[#allocation2 + $0xc0] sm:$0xff] %v948
    %1045 = vst [vmem:[#allocation2 + $0xc8] sm:$0xff] %v949
    %1046 = vst [vmem:[#allocation2 + $0xd0] sm:$0xff] %v950
    %1047 = vst [vmem:[#allocation2 + $0xd8] sm:$0xff] %v951
    %1048 = vst [vmem:[#allocation2 + $0xe0] sm:$0xff] %v952
    %1049 = vst [vmem:[#allocation2 + $0xe8] sm:$0xff] %v953
    %1050 = vst [vmem:[#allocation2 + $0xf0] sm:$0xff] %v954
    %1051 = vst [vmem:[#allocation2 + $0xf8] sm:$0xff] %v955
    %1052 = vst [vmem:[#allocation2 + $0x100] sm:$0xff] %v956
    %1053 = vst [vmem:[#allocation2 + $0x108] sm:$0xff] %v957
    %1054 = vst [vmem:[#allocation2 + $0x110] sm:$0xff] %v958
    %1055 = vst [vmem:[#allocation2 + $0x118] sm:$0xff] %v959
    %1056 = vst [vmem:[#allocation2 + $0x120] sm:$0xff] %v960
    %1057 = vst [vmem:[#allocation2 + $0x128] sm:$0xff] %v961
    %1058 = vst [vmem:[#allocation2 + $0x130] sm:$0xff] %v962
    %1059 = vst [vmem:[#allocation2 + $0x138] sm:$0xff] %v963
    %1060 = vst [vmem:[#allocation2 + $0x140] sm:$0xff] %v964
    %1061 = vst [vmem:[#allocation2 + $0x148] sm:$0xff] %v965
    %1062 = vst [vmem:[#allocation2 + $0x150] sm:$0xff] %v966
    %1063 = vst [vmem:[#allocation2 + $0x158] sm:$0xff] %v967
    %1064 = vst [vmem:[#allocation2 + $0x160] sm:$0xff] %v968
    %1065 = vst [vmem:[#allocation2 + $0x168] sm:$0xff] %v969
    %1066 = vst [vmem:[#allocation2 + $0x170] sm:$0xff] %v970
    %1067 = vst [vmem:[#allocation2 + $0x178] sm:$0xff] %v971
    %1068 = vst [vmem:[#allocation2 + $0x180] sm:$0xff] %v972
    %1069 = vst [vmem:[#allocation2 + $0x188] sm:$0xff] %v973
    %1070 = vst [vmem:[#allocation2 + $0x190] sm:$0xff] %v974
    %1071 = vst [vmem:[#allocation2 + $0x198] sm:$0xff] %v975
    %1072 = vst [vmem:[#allocation2 + $0x1a0] sm:$0xff] %v976
    %1073 = vst [vmem:[#allocation2 + $0x1a8] sm:$0xff] %v977
    %1074 = vst [vmem:[#allocation2 + $0x1b0] sm:$0xff] %v978
    %1075 = vst [vmem:[#allocation2 + $0x1b8] sm:$0xff] %v979
    %1076 = vst [vmem:[#allocation2 + $0x1c0] sm:$0xff] %v980
    %1077 = vst [vmem:[#allocation2 + $0x1c8] sm:$0xff] %v981
    %1078 = vst [vmem:[#allocation2 + $0x1d0] sm:$0xff] %v982
    %1079 = vst [vmem:[#allocation2 + $0x1d8] sm:$0xff] %v983
    %1080 = vst [vmem:[#allocation2 + $0x1e0] sm:$0xff] %v984
    %1081 = vst [vmem:[#allocation2 + $0x1e8] sm:$0xff] %v985
    %1082 = vst [vmem:[#allocation2 + $0x1f0] sm:$0xff] %v986
    %1083 = vst [vmem:[#allocation2 + $0x1f8] sm:$0xff] %v987
    %1084 = vst [vmem:[#allocation2 + $0x200] sm:$0xff] %v988
    %1085 = vst [vmem:[#allocation2 + $0x208] sm:$0xff] %v989
    %1086 = vst [vmem:[#allocation2 + $0x210] sm:$0xff] %v990
    %1087 = vst [vmem:[#allocation2 + $0x218] sm:$0xff] %v991
    %1088 = vst [vmem:[#allocation2 + $0x220] sm:$0xff] %v992
    %1089 = vst [vmem:[#allocation2 + $0x228] sm:$0xff] %v993
    %1090 = vst [vmem:[#allocation2 + $0x230] sm:$0xff] %v994
    %1091 = vst [vmem:[#allocation2 + $0x238] sm:$0xff] %v995
    %1092 = vst [vmem:[#allocation2 + $0x240] sm:$0xff] %v996
    %1093 = vst [vmem:[#allocation2 + $0x248] sm:$0xff] %v997
    %1094 = vst [vmem:[#allocation2 + $0x250] sm:$0xff] %v998
    %1095 = vst [vmem:[#allocation2 + $0x258] sm:$0xff] %v999
    %1096 = vst [vmem:[#allocation2 + $0x260] sm:$0xff] %v1000
    %1097 = vst [vmem:[#allocation2 + $0x268] sm:$0xff] %v1001
    %1098 = vst [vmem:[#allocation2 + $0x270] sm:$0xff] %v1002
    %1099 = vst [vmem:[#allocation2 + $0x278] sm:$0xff] %v1003
    %1100 = vst [vmem:[#allocation2 + $0x280] sm:$0xff] %v1004
    %1101 = vst [vmem:[#allocation2 + $0x288] sm:$0xff] %v1005
    %1102 = vst [vmem:[#allocation2 + $0x290] sm:$0xff] %v1006
    %1103 = vst [vmem:[#allocation2 + $0x298] sm:$0xff] %v1007
    %1104 = vst [vmem:[#allocation2 + $0x2a0] sm:$0xff] %v1008
    %1105 = vst [vmem:[#allocation2 + $0x2a8] sm:$0xff] %v1009
    %1106 = vst [vmem:[#allocation2 + $0x2b0] sm:$0xff] %v1010
    %1107 = vst [vmem:[#allocation2 + $0x2b8] sm:$0xff] %v1011
    %1108 = vst [vmem:[#allocation2 + $0x2c0] sm:$0xff] %v1012
    %1109 = vst [vmem:[#allocation2 + $0x2c8] sm:$0xff] %v1013
    %1110 = vst [vmem:[#allocation2 + $0x2d0] sm:$0xff] %v1014
    %1111 = vst [vmem:[#allocation2 + $0x2d8] sm:$0xff] %v1015
    %1112 = vst [vmem:[#allocation2 + $0x2e0] sm:$0xff] %v1016
    %1113 = vst [vmem:[#allocation2 + $0x2e8] sm:$0xff] %v1017
    %1114 = vst [vmem:[#allocation2 + $0x2f0] sm:$0xff] %v1018
    %1115 = vst [vmem:[#allocation2 + $0x2f8] sm:$0xff] %v1019
    // Predicated region
    $region30: #{tpu_custom_call.1} parent=1 // pred_check
      %p1116 = pneg %p54
    $region31: #{tpu_custom_call.1} parent=1 // pred_check_branch
      %1118 = sbr.rel (%p1116) target = $region33
    $region32: #{tpu_custom_call.1} parent=1 // pred_region
      %v1119 = vld [vmem:[#allocation2] sm:$0xff]
      %v1120 = vld [vmem:[#allocation2 + $0x8] sm:$0xff]
      %v1121 = vld [vmem:[#allocation2 + $0x10] sm:$0xff]
      %v1122 = vld [vmem:[#allocation2 + $0x18] sm:$0xff]
      %v1123 = vld [vmem:[#allocation2 + $0x20] sm:$0xff]
      %v1124 = vld [vmem:[#allocation2 + $0x28] sm:$0xff]
      %v1125 = vld [vmem:[#allocation2 + $0x30] sm:$0xff]
      %v1126 = vld [vmem:[#allocation2 + $0x38] sm:$0xff]
      %v1127 = vld [vmem:[#allocation2 + $0x40] sm:$0xff]
      %v1128 = vld [vmem:[#allocation2 + $0x48] sm:$0xff]
      %v1129 = vld [vmem:[#allocation2 + $0x50] sm:$0xff]
      %v1130 = vld [vmem:[#allocation2 + $0x58] sm:$0xff]
      %v1131 = vld [vmem:[#allocation2 + $0x60] sm:$0xff]
      %v1132 = vld [vmem:[#allocation2 + $0x68] sm:$0xff]
      %v1133 = vld [vmem:[#allocation2 + $0x70] sm:$0xff]
      %v1134 = vld [vmem:[#allocation2 + $0x78] sm:$0xff]
      %v1135 = vld [vmem:[#allocation2 + $0x80] sm:$0xff]
      %v1136 = vld [vmem:[#allocation2 + $0x88] sm:$0xff]
      %v1137 = vld [vmem:[#allocation2 + $0x90] sm:$0xff]
      %v1138 = vld [vmem:[#allocation2 + $0x98] sm:$0xff]
      %v1139 = vld [vmem:[#allocation2 + $0xa0] sm:$0xff]
      %v1140 = vld [vmem:[#allocation2 + $0xa8] sm:$0xff]
      %v1141 = vld [vmem:[#allocation2 + $0xb0] sm:$0xff]
      %v1142 = vld [vmem:[#allocation2 + $0xb8] sm:$0xff]
      %v1143 = vld [vmem:[#allocation2 + $0xc0] sm:$0xff]
      %v1144 = vld [vmem:[#allocation2 + $0xc8] sm:$0xff]
      %v1145 = vld [vmem:[#allocation2 + $0xd0] sm:$0xff]
      %v1146 = vld [vmem:[#allocation2 + $0xd8] sm:$0xff]
      %v1147 = vld [vmem:[#allocation2 + $0xe0] sm:$0xff]
      %v1148 = vld [vmem:[#allocation2 + $0xe8] sm:$0xff]
      %v1149 = vld [vmem:[#allocation2 + $0xf0] sm:$0xff]
      %v1150 = vld [vmem:[#allocation2 + $0xf8] sm:$0xff]
      %v1151 = vld [vmem:[#allocation2 + $0x100] sm:$0xff]
      %v1152 = vld [vmem:[#allocation2 + $0x108] sm:$0xff]
      %v1153 = vld [vmem:[#allocation2 + $0x110] sm:$0xff]
      %v1154 = vld [vmem:[#allocation2 + $0x118] sm:$0xff]
      %v1155 = vld [vmem:[#allocation2 + $0x120] sm:$0xff]
      %v1156 = vld [vmem:[#allocation2 + $0x128] sm:$0xff]
      %v1157 = vld [vmem:[#allocation2 + $0x130] sm:$0xff]
      %v1158 = vld [vmem:[#allocation2 + $0x138] sm:$0xff]
      %v1159 = vld [vmem:[#allocation2 + $0x140] sm:$0xff]
      %v1160 = vld [vmem:[#allocation2 + $0x148] sm:$0xff]
      %v1161 = vld [vmem:[#allocation2 + $0x150] sm:$0xff]
      %v1162 = vld [vmem:[#allocation2 + $0x158] sm:$0xff]
      %v1163 = vld [vmem:[#allocation2 + $0x160] sm:$0xff]
      %v1164 = vld [vmem:[#allocation2 + $0x168] sm:$0xff]
      %v1165 = vld [vmem:[#allocation2 + $0x170] sm:$0xff]
      %v1166 = vld [vmem:[#allocation2 + $0x178] sm:$0xff]
      %v1167 = vld [vmem:[#allocation2 + $0x180] sm:$0xff]
      %v1168 = vld [vmem:[#allocation2 + $0x188] sm:$0xff]
      %v1169 = vld [vmem:[#allocation2 + $0x190] sm:$0xff]
      %v1170 = vld [vmem:[#allocation2 + $0x198] sm:$0xff]
      %v1171 = vld [vmem:[#allocation2 + $0x1a0] sm:$0xff]
      %v1172 = vld [vmem:[#allocation2 + $0x1a8] sm:$0xff]
      %v1173 = vld [vmem:[#allocation2 + $0x1b0] sm:$0xff]
      %v1174 = vld [vmem:[#allocation2 + $0x1b8] sm:$0xff]
      %v1175 = vld [vmem:[#allocation2 + $0x1c0] sm:$0xff]
      %v1176 = vld [vmem:[#allocation2 + $0x1c8] sm:$0xff]
      %v1177 = vld [vmem:[#allocation2 + $0x1d0] sm:$0xff]
      %v1178 = vld [vmem:[#allocation2 + $0x1d8] sm:$0xff]
      %v1179 = vld [vmem:[#allocation2 + $0x1e0] sm:$0xff]
      %v1180 = vld [vmem:[#allocation2 + $0x1e8] sm:$0xff]
      %v1181 = vld [vmem:[#allocation2 + $0x1f0] sm:$0xff]
      %v1182 = vld [vmem:[#allocation2 + $0x1f8] sm:$0xff]
      %v1183 = vld [vmem:[#allocation2 + $0x200] sm:$0xff]
      %v1184 = vld [vmem:[#allocation2 + $0x208] sm:$0xff]
      %v1185 = vld [vmem:[#allocation2 + $0x210] sm:$0xff]
      %v1186 = vld [vmem:[#allocation2 + $0x218] sm:$0xff]
      %v1187 = vld [vmem:[#allocation2 + $0x220] sm:$0xff]
      %v1188 = vld [vmem:[#allocation2 + $0x228] sm:$0xff]
      %v1189 = vld [vmem:[#allocation2 + $0x230] sm:$0xff]
      %v1190 = vld [vmem:[#allocation2 + $0x238] sm:$0xff]
      %v1191 = vld [vmem:[#allocation2 + $0x240] sm:$0xff]
      %v1192 = vld [vmem:[#allocation2 + $0x248] sm:$0xff]
      %v1193 = vld [vmem:[#allocation2 + $0x250] sm:$0xff]
      %v1194 = vld [vmem:[#allocation2 + $0x258] sm:$0xff]
      %v1195 = vld [vmem:[#allocation2 + $0x260] sm:$0xff]
      %v1196 = vld [vmem:[#allocation2 + $0x268] sm:$0xff]
      %v1197 = vld [vmem:[#allocation2 + $0x270] sm:$0xff]
      %v1198 = vld [vmem:[#allocation2 + $0x278] sm:$0xff]
      %v1199 = vld [vmem:[#allocation2 + $0x280] sm:$0xff]
      %v1200 = vld [vmem:[#allocation2 + $0x288] sm:$0xff]
      %v1201 = vld [vmem:[#allocation2 + $0x290] sm:$0xff]
      %v1202 = vld [vmem:[#allocation2 + $0x298] sm:$0xff]
      %v1203 = vld [vmem:[#allocation2 + $0x2a0] sm:$0xff]
      %v1204 = vld [vmem:[#allocation2 + $0x2a8] sm:$0xff]
      %v1205 = vld [vmem:[#allocation2 + $0x2b0] sm:$0xff]
      %v1206 = vld [vmem:[#allocation2 + $0x2b8] sm:$0xff]
      %v1207 = vld [vmem:[#allocation2 + $0x2c0] sm:$0xff]
      %v1208 = vld [vmem:[#allocation2 + $0x2c8] sm:$0xff]
      %v1209 = vld [vmem:[#allocation2 + $0x2d0] sm:$0xff]
      %v1210 = vld [vmem:[#allocation2 + $0x2d8] sm:$0xff]
      %v1211 = vld [vmem:[#allocation2 + $0x2e0] sm:$0xff]
      %v1212 = vld [vmem:[#allocation2 + $0x2e8] sm:$0xff]
      %v1213 = vld [vmem:[#allocation2 + $0x2f0] sm:$0xff]
      %v1214 = vld [vmem:[#allocation2 + $0x2f8] sm:$0xff]
      %v1215 = vld [vmem:[#allocation8] sm:$0x3]
      %v1217 = vlaneseq
      %v1218 = vshrl.u32 %v1217, 7
      %v1219 = vsub.s32 0, %v1218
      %v1220 = vrot.slane %v1215, %v1219
      %v1221 = vlaneseq
      %v1222 = vshrl.u32 %v1221, 7
      %v1223 = vsub.s32 1, %v1222
      %v1224 = vrot.slane %v1215, %v1223
      %v1227 = vadd.f32 %v1119, %v1220
      %v1228 = vadd.f32 %v1120, %v1224
      %v1229 = vadd.f32 %v1121, %v1220
      %v1230 = vadd.f32 %v1122, %v1224
      %v1231 = vadd.f32 %v1123, %v1220
      %v1232 = vadd.f32 %v1124, %v1224
      %v1233 = vadd.f32 %v1125, %v1220
      %v1234 = vadd.f32 %v1126, %v1224
      %v1235 = vadd.f32 %v1127, %v1220
      %v1236 = vadd.f32 %v1128, %v1224
      %v1237 = vadd.f32 %v1129, %v1220
      %v1238 = vadd.f32 %v1130, %v1224
      %v1239 = vadd.f32 %v1131, %v1220
      %v1240 = vadd.f32 %v1132, %v1224
      %v1241 = vadd.f32 %v1133, %v1220
      %v1242 = vadd.f32 %v1134, %v1224
      %v1243 = vadd.f32 %v1135, %v1220
      %v1244 = vadd.f32 %v1136, %v1224
      %v1245 = vadd.f32 %v1137, %v1220
      %v1246 = vadd.f32 %v1138, %v1224
      %v1247 = vadd.f32 %v1139, %v1220
      %v1248 = vadd.f32 %v1140, %v1224
      %v1249 = vadd.f32 %v1141, %v1220
      %v1250 = vadd.f32 %v1142, %v1224
      %v1251 = vadd.f32 %v1143, %v1220
      %v1252 = vadd.f32 %v1144, %v1224
      %v1253 = vadd.f32 %v1145, %v1220
      %v1254 = vadd.f32 %v1146, %v1224
      %v1255 = vadd.f32 %v1147, %v1220
      %v1256 = vadd.f32 %v1148, %v1224
      %v1257 = vadd.f32 %v1149, %v1220
      %v1258 = vadd.f32 %v1150, %v1224
      %v1259 = vadd.f32 %v1151, %v1220
      %v1260 = vadd.f32 %v1152, %v1224
      %v1261 = vadd.f32 %v1153, %v1220
      %v1262 = vadd.f32 %v1154, %v1224
      %v1263 = vadd.f32 %v1155, %v1220
      %v1264 = vadd.f32 %v1156, %v1224
      %v1265 = vadd.f32 %v1157, %v1220
      %v1266 = vadd.f32 %v1158, %v1224
      %v1267 = vadd.f32 %v1159, %v1220
      %v1268 = vadd.f32 %v1160, %v1224
      %v1269 = vadd.f32 %v1161, %v1220
      %v1270 = vadd.f32 %v1162, %v1224
      %v1271 = vadd.f32 %v1163, %v1220
      %v1272 = vadd.f32 %v1164, %v1224
      %v1273 = vadd.f32 %v1165, %v1220
      %v1274 = vadd.f32 %v1166, %v1224
      %v1275 = vadd.f32 %v1167, %v1220
      %v1276 = vadd.f32 %v1168, %v1224
      %v1277 = vadd.f32 %v1169, %v1220
      %v1278 = vadd.f32 %v1170, %v1224
      %v1279 = vadd.f32 %v1171, %v1220
      %v1280 = vadd.f32 %v1172, %v1224
      %v1281 = vadd.f32 %v1173, %v1220
      %v1282 = vadd.f32 %v1174, %v1224
      %v1283 = vadd.f32 %v1175, %v1220
      %v1284 = vadd.f32 %v1176, %v1224
      %v1285 = vadd.f32 %v1177, %v1220
      %v1286 = vadd.f32 %v1178, %v1224
      %v1287 = vadd.f32 %v1179, %v1220
      %v1288 = vadd.f32 %v1180, %v1224
      %v1289 = vadd.f32 %v1181, %v1220
      %v1290 = vadd.f32 %v1182, %v1224
      %v1291 = vadd.f32 %v1183, %v1220
      %v1292 = vadd.f32 %v1184, %v1224
      %v1293 = vadd.f32 %v1185, %v1220
      %v1294 = vadd.f32 %v1186, %v1224
      %v1295 = vadd.f32 %v1187, %v1220
      %v1296 = vadd.f32 %v1188, %v1224
      %v1297 = vadd.f32 %v1189, %v1220
      %v1298 = vadd.f32 %v1190, %v1224
      %v1299 = vadd.f32 %v1191, %v1220
      %v1300 = vadd.f32 %v1192, %v1224
      %v1301 = vadd.f32 %v1193, %v1220
      %v1302 = vadd.f32 %v1194, %v1224
      %v1303 = vadd.f32 %v1195, %v1220
      %v1304 = vadd.f32 %v1196, %v1224
      %v1305 = vadd.f32 %v1197, %v1220
      %v1306 = vadd.f32 %v1198, %v1224
      %v1307 = vadd.f32 %v1199, %v1220
      %v1308 = vadd.f32 %v1200, %v1224
      %v1309 = vadd.f32 %v1201, %v1220
      %v1310 = vadd.f32 %v1202, %v1224
      %v1311 = vadd.f32 %v1203, %v1220
      %v1312 = vadd.f32 %v1204, %v1224
      %v1313 = vadd.f32 %v1205, %v1220
      %v1314 = vadd.f32 %v1206, %v1224
      %v1315 = vadd.f32 %v1207, %v1220
      %v1316 = vadd.f32 %v1208, %v1224
      %v1317 = vadd.f32 %v1209, %v1220
      %v1318 = vadd.f32 %v1210, %v1224
      %v1319 = vadd.f32 %v1211, %v1220
      %v1320 = vadd.f32 %v1212, %v1224
      %v1321 = vadd.f32 %v1213, %v1220
      %v1322 = vadd.f32 %v1214, %v1224
      %1323 = vst [vmem:[#allocation9] sm:$0xff] %v1227
      %1324 = vst [vmem:[#allocation9 + $0x8] sm:$0xff] %v1228
      %1325 = vst [vmem:[#allocation9 + $0x10] sm:$0xff] %v1229
      %1326 = vst [vmem:[#allocation9 + $0x18] sm:$0xff] %v1230
      %1327 = vst [vmem:[#allocation9 + $0x20] sm:$0xff] %v1231
      %1328 = vst [vmem:[#allocation9 + $0x28] sm:$0xff] %v1232
      %1329 = vst [vmem:[#allocation9 + $0x30] sm:$0xff] %v1233
      %1330 = vst [vmem:[#allocation9 + $0x38] sm:$0xff] %v1234
      %1331 = vst [vmem:[#allocation9 + $0x40] sm:$0xff] %v1235
      %1332 = vst [vmem:[#allocation9 + $0x48] sm:$0xff] %v1236
      %1333 = vst [vmem:[#allocation9 + $0x50] sm:$0xff] %v1237
      %1334 = vst [vmem:[#allocation9 + $0x58] sm:$0xff] %v1238
      %1335 = vst [vmem:[#allocation9 + $0x60] sm:$0xff] %v1239
      %1336 = vst [vmem:[#allocation9 + $0x68] sm:$0xff] %v1240
      %1337 = vst [vmem:[#allocation9 + $0x70] sm:$0xff] %v1241
      %1338 = vst [vmem:[#allocation9 + $0x78] sm:$0xff] %v1242
      %1339 = vst [vmem:[#allocation9 + $0x80] sm:$0xff] %v1243
      %1340 = vst [vmem:[#allocation9 + $0x88] sm:$0xff] %v1244
      %1341 = vst [vmem:[#allocation9 + $0x90] sm:$0xff] %v1245
      %1342 = vst [vmem:[#allocation9 + $0x98] sm:$0xff] %v1246
      %1343 = vst [vmem:[#allocation9 + $0xa0] sm:$0xff] %v1247
      %1344 = vst [vmem:[#allocation9 + $0xa8] sm:$0xff] %v1248
      %1345 = vst [vmem:[#allocation9 + $0xb0] sm:$0xff] %v1249
      %1346 = vst [vmem:[#allocation9 + $0xb8] sm:$0xff] %v1250
      %1347 = vst [vmem:[#allocation9 + $0xc0] sm:$0xff] %v1251
      %1348 = vst [vmem:[#allocation9 + $0xc8] sm:$0xff] %v1252
      %1349 = vst [vmem:[#allocation9 + $0xd0] sm:$0xff] %v1253
      %1350 = vst [vmem:[#allocation9 + $0xd8] sm:$0xff] %v1254
      %1351 = vst [vmem:[#allocation9 + $0xe0] sm:$0xff] %v1255
      %1352 = vst [vmem:[#allocation9 + $0xe8] sm:$0xff] %v1256
      %1353 = vst [vmem:[#allocation9 + $0xf0] sm:$0xff] %v1257
      %1354 = vst [vmem:[#allocation9 + $0xf8] sm:$0xff] %v1258
      %1355 = vst [vmem:[#allocation9 + $0x100] sm:$0xff] %v1259
      %1356 = vst [vmem:[#allocation9 + $0x108] sm:$0xff] %v1260
      %1357 = vst [vmem:[#allocation9 + $0x110] sm:$0xff] %v1261
      %1358 = vst [vmem:[#allocation9 + $0x118] sm:$0xff] %v1262
      %1359 = vst [vmem:[#allocation9 + $0x120] sm:$0xff] %v1263
      %1360 = vst [vmem:[#allocation9 + $0x128] sm:$0xff] %v1264
      %1361 = vst [vmem:[#allocation9 + $0x130] sm:$0xff] %v1265
      %1362 = vst [vmem:[#allocation9 + $0x138] sm:$0xff] %v1266
      %1363 = vst [vmem:[#allocation9 + $0x140] sm:$0xff] %v1267
      %1364 = vst [vmem:[#allocation9 + $0x148] sm:$0xff] %v1268
      %1365 = vst [vmem:[#allocation9 + $0x150] sm:$0xff] %v1269
      %1366 = vst [vmem:[#allocation9 + $0x158] sm:$0xff] %v1270
      %1367 = vst [vmem:[#allocation9 + $0x160] sm:$0xff] %v1271
      %1368 = vst [vmem:[#allocation9 + $0x168] sm:$0xff] %v1272
      %1369 = vst [vmem:[#allocation9 + $0x170] sm:$0xff] %v1273
      %1370 = vst [vmem:[#allocation9 + $0x178] sm:$0xff] %v1274
      %1371 = vst [vmem:[#allocation9 + $0x180] sm:$0xff] %v1275
      %1372 = vst [vmem:[#allocation9 + $0x188] sm:$0xff] %v1276
      %1373 = vst [vmem:[#allocation9 + $0x190] sm:$0xff] %v1277
      %1374 = vst [vmem:[#allocation9 + $0x198] sm:$0xff] %v1278
      %1375 = vst [vmem:[#allocation9 + $0x1a0] sm:$0xff] %v1279
      %1376 = vst [vmem:[#allocation9 + $0x1a8] sm:$0xff] %v1280
      %1377 = vst [vmem:[#allocation9 + $0x1b0] sm:$0xff] %v1281
      %1378 = vst [vmem:[#allocation9 + $0x1b8] sm:$0xff] %v1282
      %1379 = vst [vmem:[#allocation9 + $0x1c0] sm:$0xff] %v1283
      %1380 = vst [vmem:[#allocation9 + $0x1c8] sm:$0xff] %v1284
      %1381 = vst [vmem:[#allocation9 + $0x1d0] sm:$0xff] %v1285
      %1382 = vst [vmem:[#allocation9 + $0x1d8] sm:$0xff] %v1286
      %1383 = vst [vmem:[#allocation9 + $0x1e0] sm:$0xff] %v1287
      %1384 = vst [vmem:[#allocation9 + $0x1e8] sm:$0xff] %v1288
      %1385 = vst [vmem:[#allocation9 + $0x1f0] sm:$0xff] %v1289
      %1386 = vst [vmem:[#allocation9 + $0x1f8] sm:$0xff] %v1290
      %1387 = vst [vmem:[#allocation9 + $0x200] sm:$0xff] %v1291
      %1388 = vst [vmem:[#allocation9 + $0x208] sm:$0xff] %v1292
      %1389 = vst [vmem:[#allocation9 + $0x210] sm:$0xff] %v1293
      %1390 = vst [vmem:[#allocation9 + $0x218] sm:$0xff] %v1294
      %1391 = vst [vmem:[#allocation9 + $0x220] sm:$0xff] %v1295
      %1392 = vst [vmem:[#allocation9 + $0x228] sm:$0xff] %v1296
      %1393 = vst [vmem:[#allocation9 + $0x230] sm:$0xff] %v1297
      %1394 = vst [vmem:[#allocation9 + $0x238] sm:$0xff] %v1298
      %1395 = vst [vmem:[#allocation9 + $0x240] sm:$0xff] %v1299
      %1396 = vst [vmem:[#allocation9 + $0x248] sm:$0xff] %v1300
      %1397 = vst [vmem:[#allocation9 + $0x250] sm:$0xff] %v1301
      %1398 = vst [vmem:[#allocation9 + $0x258] sm:$0xff] %v1302
      %1399 = vst [vmem:[#allocation9 + $0x260] sm:$0xff] %v1303
      %1400 = vst [vmem:[#allocation9 + $0x268] sm:$0xff] %v1304
      %1401 = vst [vmem:[#allocation9 + $0x270] sm:$0xff] %v1305
      %1402 = vst [vmem:[#allocation9 + $0x278] sm:$0xff] %v1306
      %1403 = vst [vmem:[#allocation9 + $0x280] sm:$0xff] %v1307
      %1404 = vst [vmem:[#allocation9 + $0x288] sm:$0xff] %v1308
      %1405 = vst [vmem:[#allocation9 + $0x290] sm:$0xff] %v1309
      %1406 = vst [vmem:[#allocation9 + $0x298] sm:$0xff] %v1310
      %1407 = vst [vmem:[#allocation9 + $0x2a0] sm:$0xff] %v1311
      %1408 = vst [vmem:[#allocation9 + $0x2a8] sm:$0xff] %v1312
      %1409 = vst [vmem:[#allocation9 + $0x2b0] sm:$0xff] %v1313
      %1410 = vst [vmem:[#allocation9 + $0x2b8] sm:$0xff] %v1314
      %1411 = vst [vmem:[#allocation9 + $0x2c0] sm:$0xff] %v1315
      %1412 = vst [vmem:[#allocation9 + $0x2c8] sm:$0xff] %v1316
      %1413 = vst [vmem:[#allocation9 + $0x2d0] sm:$0xff] %v1317
      %1414 = vst [vmem:[#allocation9 + $0x2d8] sm:$0xff] %v1318
      %1415 = vst [vmem:[#allocation9 + $0x2e0] sm:$0xff] %v1319
      %1416 = vst [vmem:[#allocation9 + $0x2e8] sm:$0xff] %v1320
      %1417 = vst [vmem:[#allocation9 + $0x2f0] sm:$0xff] %v1321
      %1418 = vst [vmem:[#allocation9 + $0x2f8] sm:$0xff] %v1322
    $region33: #{tpu_custom_call.1} parent=1 // pred_fallthru
      _
    // Predicated region
    $region34: #{tpu_custom_call.1} parent=1 // pred_check
      _
    $region35: #{tpu_custom_call.1} parent=1 // pred_check_branch
      %1420 = sbr.rel (0) target = $region37
    $region36: #{tpu_custom_call.1} parent=1 // pred_region
      %s1422 = ssub.s32 12288, 12288
      %1423 = vsyncadd [#allocation5], %s1422
      %s1424 = sshll.u32 [#allocation9], 4
      %s1425 = int_to_ptr.vmem [resolvable:$true] %s1424
      %1430 = dma.vmem_to_hbm [thread:$0]  %s1425, 12288, %s3, [#allocation5], 256, 256, 16
    $region37: #{tpu_custom_call.1} parent=1 // pred_fallthru
      _
    // Predicated region
    $region38: #{tpu_custom_call.1} parent=1 // pred_check
      _
    $region39: #{tpu_custom_call.1} parent=1 // pred_check_branch
      %1432 = sbr.rel (0) target = $region41
    $region40: #{tpu_custom_call.1} parent=1 // pred_region
      %1433 = dma.done [#allocation5], 12288
    $region41: #{tpu_custom_call.1} parent=1 // pred_fallthru
      _
    %1434 = vsyncpa [#allocation4], 1
    %1435 = vsyncpa [#allocation7], 1
    %1436 = vsyncpa [#allocation5], 1

</llo_original>
